<compile_context>
chip_gen: v7x
topology: tpu7x:2x2x1
jax: 0.10.0
libtpu: 0.0.40
codegen_flags: <defaults>
</compile_context>

<pallas_src>
import functools

import jax
import jax.numpy as jnp
from jax.experimental import pallas as pl
from jax.experimental.pallas import tpu as pltpu


def _prelu(x, a):
    return jnp.where(x > 0, x, a * x)


def _im2col_fill(col_ref, src, row0, nch, row_shift, tl, *, Wp, K):
    """Write the K*K shifted tap slices of a flattened, padded source into the
    im2col scratch rows [row0, row0 + K*K*nch), columns [0, tl)."""
    for kh in range(K):
        for kw in range(K):
            t = kh * K + kw
            off = (kh + row_shift) * Wp + kw
            col_ref[row0 + t * nch:row0 + (t + 1) * nch, 0:tl] = (
                src[:, off:off + tl].astype(jnp.bfloat16))


def _dense_residual_kernel(
        x_ref, rid_ref, cid_ref,
        w1_ref, b1_ref, a1_ref,
        w2_ref, b2_ref, a2_ref,
        w3_ref, b3_ref, a3_ref,
        out_ref,
        col_ref, o1p_ref, o2p_ref, xb_ref,
        *, H, W, Wp, K, P, TH, Cin, C1):
    f32 = jnp.float32
    bf16 = jnp.bfloat16

    H1 = TH + 4 * P               # out1 rows computed per band (2P halo/side)
    H2 = TH + 2 * P               # out2 rows computed per band (P halo/side)
    TL1, TL2, TL3 = H1 * Wp, H2 * Wp, TH * Wp
    KD1 = K * K * Cin
    KD2 = K * K * (Cin + C1)
    KD3 = K * K * (Cin + 2 * C1)

    band = pl.program_id(1)
    row0 = band * TH              # absolute image row of first output row

    rid = rid_ref[...]            # (1, TL1) int32 : flat_index // Wp
    cid = cid_ref[...]            # (1, TL1) int32 : flat_index %  Wp
    col_ok = cid < W              # junk (width-padding) lanes of the layout

    # Convert the x band to bf16 once; all im2col tap copies read this.
    xb_ref[...] = x_ref[...].astype(bf16)

    # ---- conv1 : out1 on H1 rows (abs rows [row0-2P, row0+TH+2P)) ----------
    _im2col_fill(col_ref, xb_ref, 0, Cin, 0, TL1, Wp=Wp, K=K)
    acc1 = jnp.dot(w1_ref[...], col_ref[0:KD1, 0:TL1],
                   preferred_element_type=f32)
    y1 = _prelu(acc1 + b1_ref[...], a1_ref[0, 0])
    lo1 = jnp.maximum(2 * P - row0, 0)
    hi1 = jnp.minimum(H + 2 * P - row0, H1)
    m1 = col_ok & (rid >= lo1) & (rid < hi1)     # zero outside the real image
    o1 = jnp.where(m1, y1, 0.0).astype(bf16)
    o1p_ref[:, 0:P] = jnp.zeros((C1, P), bf16)   # left halo of first row only
    o1p_ref[:, P:P + TL1] = o1
    o1p_ref[:, P + TL1:P + TL1 + (Wp - P)] = jnp.zeros((C1, Wp - P), bf16)

    # ---- conv2 : out2 on H2 rows; input = [x, out1] ------------------------
    _im2col_fill(col_ref, xb_ref, 0, Cin, P, TL2, Wp=Wp, K=K)
    _im2col_fill(col_ref, o1p_ref, KD1, C1, 0, TL2, Wp=Wp, K=K)
    acc2 = jnp.dot(w2_ref[...], col_ref[0:KD2, 0:TL2],
                   preferred_element_type=f32)
    y2 = _prelu(acc2 + b2_ref[...], a2_ref[0, 0])
    lo2 = jnp.maximum(P - row0, 0)
    hi2 = jnp.minimum(H + P - row0, H2)
    rid2 = rid[:, 0:TL2]
    m2 = col_ok[:, 0:TL2] & (rid2 >= lo2) & (rid2 < hi2)
    o2 = jnp.where(m2, y2, 0.0).astype(bf16)
    o2p_ref[:, 0:P] = jnp.zeros((C1, P), bf16)
    o2p_ref[:, P:P + TL2] = o2
    o2p_ref[:, P + TL2:P + TL2 + (Wp - P)] = jnp.zeros((C1, Wp - P), bf16)

    # ---- conv3 + residual : TH rows; input = [x, out1, out2] ---------------
    _im2col_fill(col_ref, xb_ref, 0, Cin, 2 * P, TL3, Wp=Wp, K=K)
    _im2col_fill(col_ref, o1p_ref, KD1, C1, P, TL3, Wp=Wp, K=K)
    _im2col_fill(col_ref, o2p_ref, KD2, C1, 0, TL3, Wp=Wp, K=K)
    acc3 = jnp.dot(w3_ref[...], col_ref[0:KD3, 0:TL3],
                   preferred_element_type=f32)
    y3 = _prelu(acc3 + b3_ref[...], a3_ref[0, 0])

    roff = 3 * P * Wp + P                       # residual: x read once, f32
    out_ref[...] = y3 + x_ref[:, roff:roff + TL3]


def dense_residual_block(x_nchw, params, *, K=3, TH=None):
    """params = (w1, b1, a1, w2, b2, a2, w3, b3, a3); weights HWIO,
    biases shape (C,), PReLU slopes shape (1,)."""
    w1, b1, a1, w2, b2, a2, w3, b3, a3 = params
    N, Cin, H, W = x_nchw.shape
    C1 = w1.shape[-1]
    Cout = w3.shape[-1]
    assert Cout == Cin, "residual add requires out_channels == in_channels"
    assert K % 2 == 1
    P = (K - 1) // 2
    assert w1.shape[:3] == (K, K, Cin)
    assert w2.shape[2] == Cin + C1 and w3.shape[2] == Cin + 2 * C1

    Wp = W + 2 * P
    KD1 = K * K * Cin
    KD2 = K * K * (Cin + C1)
    KD3 = K * K * (Cin + 2 * C1)

    def band_bytes(th):
        hx = th + 6 * P + 1
        h1 = th + 4 * P
        h2 = th + 2 * P
        xb_f32 = Cin * hx * Wp * 4
        xb_bf16 = Cin * hx * Wp * 2
        ob = Cout * th * Wp * 4
        col = KD3 * h1 * Wp * 2
        pads = C1 * ((h1 + 1) + (h2 + 1)) * Wp * 2
        ids = 2 * h1 * Wp * 4
        wts = 2 * (C1 * KD1 + C1 * KD2 + Cout * KD3)
        return 2 * (xb_f32 + ob) + xb_bf16 + col + pads + ids + wts + (1 << 20)

    if TH is None:  # largest divisor of H whose band working set is modest
        TH = 1
        for cand in range(H, 0, -1):
            if H % cand == 0 and band_bytes(cand) <= 8 * 2 ** 20:
                TH = cand
                break
    TH = max(1, min(TH, H))
    while H % TH:
        TH -= 1
    NB = H // TH

    Hx = TH + 6 * P + 1           # x rows per band: 3P halo/side + guard row
    H1 = TH + 4 * P
    TL1 = H1 * Wp
    TL3 = TH * Wp
    Lx = Hx * Wp

    f32, bf16 = jnp.float32, jnp.bfloat16

    # Zero-pad once on the host, cut into overlapping row bands, flatten.
    xpad = jnp.pad(x_nchw.astype(f32),
                   ((0, 0), (0, 0), (3 * P, 3 * P + 1), (P, P)))
    x_bands = jnp.stack(
        [xpad[:, :, b * TH:b * TH + Hx, :] for b in range(NB)], axis=1)
    x_bands = x_bands.reshape(N, NB, Cin, Lx)

    # Lane-dense weight matrices (C_out, K*K*C_in), tap-major / channel-minor,
    # with conv2/conv3 pre-split along the (never materialized) concat axis.
    def wmat(w_hwio):
        return jnp.transpose(w_hwio, (3, 0, 1, 2)).reshape(w_hwio.shape[-1], -1)

    w1m = wmat(w1).astype(bf16)
    w2m = jnp.concatenate(
        [wmat(w2[:, :, :Cin, :]), wmat(w2[:, :, Cin:, :])], axis=1).astype(bf16)
    w3m = jnp.concatenate(
        [wmat(w3[:, :, :Cin, :]), wmat(w3[:, :, Cin:Cin + C1, :]),
         wmat(w3[:, :, Cin + C1:, :])], axis=1).astype(bf16)

    b1c = jnp.asarray(b1, f32).reshape(C1, 1)
    b2c = jnp.asarray(b2, f32).reshape(C1, 1)
    b3c = jnp.asarray(b3, f32).reshape(Cout, 1)
    a1s = jnp.asarray(a1, f32).reshape(1, 1)
    a2s = jnp.asarray(a2, f32).reshape(1, 1)
    a3s = jnp.asarray(a3, f32).reshape(1, 1)

    flat = jnp.arange(TL1, dtype=jnp.int32)
    row_ids = (flat // Wp)[None, :]
    col_ids = (flat % Wp)[None, :]

    kernel = functools.partial(
        _dense_residual_kernel,
        H=H, W=W, Wp=Wp, K=K, P=P, TH=TH, Cin=Cin, C1=C1)

    const = lambda n, b: (0, 0)

    out_flat = pl.pallas_call(
        kernel,
        out_shape=jax.ShapeDtypeStruct((N, NB, Cout, TL3), f32),
        grid=(N, NB),
        in_specs=[
            pl.BlockSpec((None, None, Cin, Lx), lambda n, b: (n, b, 0, 0)),
            pl.BlockSpec((1, TL1), const),                 # row_ids
            pl.BlockSpec((1, TL1), const),                 # col_ids
            pl.BlockSpec((C1, KD1), const),                # w1
            pl.BlockSpec((C1, 1), const),                  # b1
            pl.BlockSpec(memory_space=pltpu.MemorySpace.SMEM),  # a1 (scalar)
            pl.BlockSpec((C1, KD2), const),                # w2
            pl.BlockSpec((C1, 1), const),                  # b2
            pl.BlockSpec(memory_space=pltpu.MemorySpace.SMEM),  # a2
            pl.BlockSpec((Cout, KD3), const),              # w3
            pl.BlockSpec((Cout, 1), const),                # b3
            pl.BlockSpec(memory_space=pltpu.MemorySpace.SMEM),  # a3
        ],
        out_specs=pl.BlockSpec((None, None, Cout, TL3),
                               lambda n, b: (n, b, 0, 0)),
        scratch_shapes=[
            pltpu.VMEM((KD3, TL1), bf16),                  # im2col buffer
            pltpu.VMEM((C1, (H1 + 1) * Wp), bf16),         # padded out1
            pltpu.VMEM((C1, (TH + 2 * P + 1) * Wp), bf16),  # padded out2
            pltpu.VMEM((Cin, Lx), bf16),                   # bf16 copy of x band
        ],
        compiler_params=pltpu.CompilerParams(
            dimension_semantics=("parallel", "parallel"),
            vmem_limit_bytes=int(min(max(band_bytes(TH), 16 * 2 ** 20),
                                     56 * 2 ** 20)),
        ),
    )(x_bands, row_ids, col_ids,
      w1m, b1c, a1s, w2m, b2c, a2s, w3m, b3c, a3s)

    # Drop the width-padding junk lanes and restitch the bands -> NCHW.
    out = out_flat.reshape(N, NB, Cout, TH, Wp)[:, :, :, :, :W]
    out = out.transpose(0, 2, 1, 3, 4).reshape(N, Cout, H, W)
    return out


def reference_forward(x_nchw, params, *, K=3, matmul_dtype=jnp.float32):
    """Pure-JAX reference matching the PyTorch forward (optionally with bf16
    matmul operands to mirror the kernel's mixed precision)."""
    w1, b1, a1, w2, b2, a2, w3, b3, a3 = params
    P = (K - 1) // 2
    x = jnp.transpose(x_nchw, (0, 2, 3, 1)).astype(jnp.float32)

    def conv_prelu(inp, w, b, a):
        y = jax.lax.conv_general_dilated(
            inp.astype(matmul_dtype), w.astype(matmul_dtype),
            window_strides=(1, 1), padding=[(P, P), (P, P)],
            dimension_numbers=('NHWC', 'HWIO', 'NHWC'),
            preferred_element_type=jnp.float32)
        y = y + b.reshape(1, 1, 1, -1).astype(jnp.float32)
        return jnp.where(y > 0, y, a.reshape(()).astype(jnp.float32) * y)

    out1 = conv_prelu(x, w1, b1, a1)
    cat = jnp.concatenate([x, out1], axis=-1)
    out2 = conv_prelu(cat, w2, b2, a2)
    cat2 = jnp.concatenate([cat, out2], axis=-1)
    out3 = conv_prelu(cat2, w3, b3, a3)
    return jnp.transpose(out3 + x, (0, 3, 1, 2))


if __name__ == "__main__":
    # Small shapes: batch=2, in_channels=out_channels=8, 16x16 spatial,
    # kernel_size=3, padding=1 (spatial-preserving, as the residual requires).
    N, Cin, H, W = 2, 8, 16, 16
    Cout = Cin
    C1 = Cin // 2          # int(in_channels / 2.0)
    K = 3

    key = jax.random.PRNGKey(0)
    ks = jax.random.split(key, 7)

    x = jax.random.normal(ks[0], (N, Cin, H, W), jnp.float32)

    # Conv weights in HWIO, biases (C,), single shared PReLU slope init 0.25.
    w1 = 0.1 * jax.random.normal(ks[1], (K, K, Cin, C1), jnp.float32)
    b1 = 0.1 * jax.random.normal(ks[2], (C1,), jnp.float32)
    a1 = jnp.full((1,), 0.25, jnp.float32)
    w2 = 0.1 * jax.random.normal(ks[3], (K, K, Cin + C1, C1), jnp.float32)
    b2 = 0.1 * jax.random.normal(ks[4], (C1,), jnp.float32)
    a2 = jnp.full((1,), 0.25, jnp.float32)
    w3 = 0.1 * jax.random.normal(ks[5], (K, K, Cin + 2 * C1, Cout), jnp.float32)
    b3 = 0.1 * jax.random.normal(ks[6], (Cout,), jnp.float32)
    a3 = jnp.full((1,), 0.25, jnp.float32)
    params = (w1, b1, a1, w2, b2, a2, w3, b3, a3)

    fwd = jax.jit(lambda xx, pp: dense_residual_block(xx, pp, K=K, TH=8))
    out = jax.block_until_ready(fwd(x, params))
    assert out.shape == (N, Cout, H, W)

    # Tight check against a bf16-operand reference (same mixed precision),
    # plus a loose sanity check against the pure-f32 module forward.
    ref_bf16 = jax.block_until_ready(
        reference_forward(x, params, K=K, matmul_dtype=jnp.bfloat16))
    ref_f32 = jax.block_until_ready(reference_forward(x, params, K=K))
    err_tight = float(jnp.max(jnp.abs(out - ref_bf16)))
    err_loose = float(jnp.max(jnp.abs(out - ref_f32)))
    assert err_tight < 1e-2, f"mismatch vs bf16 reference: {err_tight}"
    assert err_loose < 1e-1, f"mismatch vs f32 reference: {err_loose}"

    print("KERNEL_OK")
</pallas_src>

<mosaic_0001>
module attributes {stable_mosaic.version = 11 : i64} {
  func.func @_dense_residual_kernel(%arg0: i32, %arg1: i32, %arg2: memref<1x1x8x270xf32, #tpu.memory_space<vmem>>, %arg3: memref<1x216xi32, #tpu.memory_space<vmem>>, %arg4: memref<1x216xi32, #tpu.memory_space<vmem>>, %arg5: memref<4x72xbf16, #tpu.memory_space<vmem>>, %arg6: memref<4x1xf32, #tpu.memory_space<vmem>>, %arg7: memref<1x1xf32, #tpu.memory_space<smem>>, %arg8: memref<4x108xbf16, #tpu.memory_space<vmem>>, %arg9: memref<4x1xf32, #tpu.memory_space<vmem>>, %arg10: memref<1x1xf32, #tpu.memory_space<smem>>, %arg11: memref<8x144xbf16, #tpu.memory_space<vmem>>, %arg12: memref<8x1xf32, #tpu.memory_space<vmem>>, %arg13: memref<1x1xf32, #tpu.memory_space<smem>>, %arg14: memref<1x1x8x144xf32, #tpu.memory_space<vmem>>, %arg15: memref<144x216xbf16, #tpu.memory_space<vmem>>, %arg16: memref<4x234xbf16, #tpu.memory_space<vmem>>, %arg17: memref<4x198xbf16, #tpu.memory_space<vmem>>, %arg18: memref<8x270xbf16, #tpu.memory_space<vmem>>) attributes {dimension_semantics = [#tpu.dimension_semantics<parallel>, #tpu.dimension_semantics<parallel>], iteration_bounds = array<i64: 2, 2>, scalar_prefetch = 0 : i64, scratch_operands = 4 : i64, tpu.core_type = #tpu.core_type<tc>, window_params = [{transform_indices = @transform_0, window_bounds = array<i64: 1, 1, 8, 270>}, {pipeline_mode = #tpu.pipeline_mode<synchronous>, transform_indices = @transform_1, window_bounds = array<i64: 1, 216>}, {pipeline_mode = #tpu.pipeline_mode<synchronous>, transform_indices = @transform_2, window_bounds = array<i64: 1, 216>}, {pipeline_mode = #tpu.pipeline_mode<synchronous>, transform_indices = @transform_3, window_bounds = array<i64: 4, 72>}, {pipeline_mode = #tpu.pipeline_mode<synchronous>, transform_indices = @transform_4, window_bounds = array<i64: 4, 1>}, {transform_indices = @transform_5, window_bounds = array<i64: 1, 1>}, {pipeline_mode = #tpu.pipeline_mode<synchronous>, transform_indices = @transform_6, window_bounds = array<i64: 4, 108>}, {pipeline_mode = #tpu.pipeline_mode<synchronous>, transform_indices = @transform_7, window_bounds = array<i64: 4, 1>}, {transform_indices = @transform_8, window_bounds = array<i64: 1, 1>}, {pipeline_mode = #tpu.pipeline_mode<synchronous>, transform_indices = @transform_9, window_bounds = array<i64: 8, 144>}, {pipeline_mode = #tpu.pipeline_mode<synchronous>, transform_indices = @transform_10, window_bounds = array<i64: 8, 1>}, {transform_indices = @transform_11, window_bounds = array<i64: 1, 1>}, {transform_indices = @transform_12, window_bounds = array<i64: 1, 1, 8, 144>}]} {
    %c8_i32 = arith.constant 8 : i32
    %0 = arith.muli %arg1, %c8_i32 : i32
    %c0 = arith.constant 0 : index
    %c0_0 = arith.constant 0 : index
    %1 = vector.load %arg3[%c0, %c0_0] : memref<1x216xi32, #tpu.memory_space<vmem>>, vector<1x216xi32>
    %c0_1 = arith.constant 0 : index
    %c0_2 = arith.constant 0 : index
    %2 = vector.load %arg4[%c0_1, %c0_2] : memref<1x216xi32, #tpu.memory_space<vmem>>, vector<1x216xi32>
    %c16_i32 = arith.constant 16 : i32
    %3 = vector.broadcast %c16_i32 : i32 to vector<1x216xi32>
    %4 = arith.cmpi slt, %2, %3 : vector<1x216xi32>
    %c0_3 = arith.constant 0 : index
    %c0_4 = arith.constant 0 : index
    %c0_5 = arith.constant 0 : index
    %c0_6 = arith.constant 0 : index
    %5 = vector.load %arg2[%c0_3, %c0_4, %c0_5, %c0_6] : memref<1x1x8x270xf32, #tpu.memory_space<vmem>>, vector<1x1x8x270xf32>
    %6 = vector.shape_cast %5 : vector<1x1x8x270xf32> to vector<8x270xf32>
    %7 = arith.truncf %6 : vector<8x270xf32> to vector<8x270xbf16>
    %c0_7 = arith.constant 0 : index
    %c0_8 = arith.constant 0 : index
    %8 = vector.load %arg18[%c0_7, %c0_8] : memref<8x270xbf16, #tpu.memory_space<vmem>>, vector<8x270xbf16>
    tpu.vector_store %arg18[%c0_7, %c0_8], %7 {strides = array<i32>} : memref<8x270xbf16, #tpu.memory_space<vmem>>, vector<8x270xbf16>,
    %c0_9 = arith.constant 0 : index
    %c0_10 = arith.constant 0 : index
    %9 = vector.load %arg18[%c0_9, %c0_10] : memref<8x270xbf16, #tpu.memory_space<vmem>>, vector<8x216xbf16>
    %c0_11 = arith.constant 0 : index
    %c0_12 = arith.constant 0 : index
    %10 = vector.load %arg15[%c0_11, %c0_12] : memref<144x216xbf16, #tpu.memory_space<vmem>>, vector<8x216xbf16>
    tpu.vector_store %arg15[%c0_11, %c0_12], %9 {strides = array<i32>} : memref<144x216xbf16, #tpu.memory_space<vmem>>, vector<8x216xbf16>,
    %c0_13 = arith.constant 0 : index
    %c1 = arith.constant 1 : index
    %11 = vector.load %arg18[%c0_13, %c1] : memref<8x270xbf16, #tpu.memory_space<vmem>>, vector<8x216xbf16>
    %c8 = arith.constant 8 : index
    %c0_14 = arith.constant 0 : index
    %12 = vector.load %arg15[%c8, %c0_14] : memref<144x216xbf16, #tpu.memory_space<vmem>>, vector<8x216xbf16>
    tpu.vector_store %arg15[%c8, %c0_14], %11 {strides = array<i32>} : memref<144x216xbf16, #tpu.memory_space<vmem>>, vector<8x216xbf16>,
    %c0_15 = arith.constant 0 : index
    %c2 = arith.constant 2 : index
    %13 = vector.load %arg18[%c0_15, %c2] : memref<8x270xbf16, #tpu.memory_space<vmem>>, vector<8x216xbf16>
    %c16 = arith.constant 16 : index
    %c0_16 = arith.constant 0 : index
    %14 = vector.load %arg15[%c16, %c0_16] : memref<144x216xbf16, #tpu.memory_space<vmem>>, vector<8x216xbf16>
    tpu.vector_store %arg15[%c16, %c0_16], %13 {strides = array<i32>} : memref<144x216xbf16, #tpu.memory_space<vmem>>, vector<8x216xbf16>,
    %c0_17 = arith.constant 0 : index
    %c18 = arith.constant 18 : index
    %15 = vector.load %arg18[%c0_17, %c18] : memref<8x270xbf16, #tpu.memory_space<vmem>>, vector<8x216xbf16>
    %c24 = arith.constant 24 : index
    %c0_18 = arith.constant 0 : index
    %16 = vector.load %arg15[%c24, %c0_18] : memref<144x216xbf16, #tpu.memory_space<vmem>>, vector<8x216xbf16>
    tpu.vector_store %arg15[%c24, %c0_18], %15 {strides = array<i32>} : memref<144x216xbf16, #tpu.memory_space<vmem>>, vector<8x216xbf16>,
    %c0_19 = arith.constant 0 : index
    %c19 = arith.constant 19 : index
    %17 = vector.load %arg18[%c0_19, %c19] : memref<8x270xbf16, #tpu.memory_space<vmem>>, vector<8x216xbf16>
    %c32 = arith.constant 32 : index
    %c0_20 = arith.constant 0 : index
    %18 = vector.load %arg15[%c32, %c0_20] : memref<144x216xbf16, #tpu.memory_space<vmem>>, vector<8x216xbf16>
    tpu.vector_store %arg15[%c32, %c0_20], %17 {strides = array<i32>} : memref<144x216xbf16, #tpu.memory_space<vmem>>, vector<8x216xbf16>,
    %c0_21 = arith.constant 0 : index
    %c20 = arith.constant 20 : index
    %19 = vector.load %arg18[%c0_21, %c20] : memref<8x270xbf16, #tpu.memory_space<vmem>>, vector<8x216xbf16>
    %c40 = arith.constant 40 : index
    %c0_22 = arith.constant 0 : index
    %20 = vector.load %arg15[%c40, %c0_22] : memref<144x216xbf16, #tpu.memory_space<vmem>>, vector<8x216xbf16>
    tpu.vector_store %arg15[%c40, %c0_22], %19 {strides = array<i32>} : memref<144x216xbf16, #tpu.memory_space<vmem>>, vector<8x216xbf16>,
    %c0_23 = arith.constant 0 : index
    %c36 = arith.constant 36 : index
    %21 = vector.load %arg18[%c0_23, %c36] : memref<8x270xbf16, #tpu.memory_space<vmem>>, vector<8x216xbf16>
    %c48 = arith.constant 48 : index
    %c0_24 = arith.constant 0 : index
    %22 = vector.load %arg15[%c48, %c0_24] : memref<144x216xbf16, #tpu.memory_space<vmem>>, vector<8x216xbf16>
    tpu.vector_store %arg15[%c48, %c0_24], %21 {strides = array<i32>} : memref<144x216xbf16, #tpu.memory_space<vmem>>, vector<8x216xbf16>,
    %c0_25 = arith.constant 0 : index
    %c37 = arith.constant 37 : index
    %23 = vector.load %arg18[%c0_25, %c37] : memref<8x270xbf16, #tpu.memory_space<vmem>>, vector<8x216xbf16>
    %c56 = arith.constant 56 : index
    %c0_26 = arith.constant 0 : index
    %24 = vector.load %arg15[%c56, %c0_26] : memref<144x216xbf16, #tpu.memory_space<vmem>>, vector<8x216xbf16>
    tpu.vector_store %arg15[%c56, %c0_26], %23 {strides = array<i32>} : memref<144x216xbf16, #tpu.memory_space<vmem>>, vector<8x216xbf16>,
    %c0_27 = arith.constant 0 : index
    %c38 = arith.constant 38 : index
    %25 = vector.load %arg18[%c0_27, %c38] : memref<8x270xbf16, #tpu.memory_space<vmem>>, vector<8x216xbf16>
    %c64 = arith.constant 64 : index
    %c0_28 = arith.constant 0 : index
    %26 = vector.load %arg15[%c64, %c0_28] : memref<144x216xbf16, #tpu.memory_space<vmem>>, vector<8x216xbf16>
    tpu.vector_store %arg15[%c64, %c0_28], %25 {strides = array<i32>} : memref<144x216xbf16, #tpu.memory_space<vmem>>, vector<8x216xbf16>,
    %c0_29 = arith.constant 0 : index
    %c0_30 = arith.constant 0 : index
    %27 = vector.load %arg5[%c0_29, %c0_30] : memref<4x72xbf16, #tpu.memory_space<vmem>>, vector<4x72xbf16>
    %c0_31 = arith.constant 0 : index
    %c0_32 = arith.constant 0 : index
    %28 = vector.load %arg15[%c0_31, %c0_32] : memref<144x216xbf16, #tpu.memory_space<vmem>>, vector<72x216xbf16>
    %cst = arith.constant dense<0.000000e+00> : vector<4x216xf32>
    %29 = tpu.matmul %27, %28, %cst {dimension_numbers = #tpu.dot_dimension_numbers<[1], [0], [0], [1], [0, 0, 1, 1], [], []>} : vector<4x72xbf16>, vector<72x216xbf16>, vector<4x216xf32> -> vector<4x216xf32>
    %c0_33 = arith.constant 0 : index
    %c0_34 = arith.constant 0 : index
    %30 = vector.load %arg6[%c0_33, %c0_34] : memref<4x1xf32, #tpu.memory_space<vmem>>, vector<4x1xf32>
    %31 = vector.broadcast %30 : vector<4x1xf32> to vector<4x216xf32>
    %32 = arith.addf %29, %31 : vector<4x216xf32>
    %c0_35 = arith.constant 0 : index
    %c0_36 = arith.constant 0 : index
    %33 = memref.load %arg7[%c0_35, %c0_36] : memref<1x1xf32, #tpu.memory_space<smem>>
    %cst_37 = arith.constant 0.000000e+00 : f32
    %34 = vector.broadcast %cst_37 : f32 to vector<4x216xf32>
    %35 = arith.cmpf ogt, %32, %34 : vector<4x216xf32>
    %36 = vector.broadcast %33 : f32 to vector<4x216xf32>
    %37 = arith.mulf %36, %32 : vector<4x216xf32>
    %38 = arith.select %35, %32, %37 : vector<4x216xi1>, vector<4x216xf32>
    %c2_i32 = arith.constant 2 : i32
    %39 = arith.subi %c2_i32, %0 : i32
    %c0_i32 = arith.constant 0 : i32
    %40 = arith.maxsi %39, %c0_i32 : i32
    %c18_i32 = arith.constant 18 : i32
    %41 = arith.subi %c18_i32, %0 : i32
    %c12_i32 = arith.constant 12 : i32
    %42 = arith.minsi %41, %c12_i32 : i32
    %43 = vector.broadcast %40 : i32 to vector<1x216xi32>
    %44 = arith.cmpi sge, %1, %43 : vector<1x216xi32>
    %45 = arith.andi %4, %44 : vector<1x216xi1>
    %46 = vector.broadcast %42 : i32 to vector<1x216xi32>
    %47 = arith.cmpi slt, %1, %46 : vector<1x216xi32>
    %48 = arith.andi %45, %47 : vector<1x216xi1>
    %cst_38 = arith.constant 0.000000e+00 : f32
    %49 = vector.shape_cast %48 : vector<1x216xi1> to vector<1x216xi1>
    %50 = vector.broadcast %49 : vector<1x216xi1> to vector<4x216xi1>
    %51 = vector.broadcast %cst_38 : f32 to vector<4x216xf32>
    %52 = arith.select %50, %38, %51 : vector<4x216xi1>, vector<4x216xf32>
    %53 = arith.truncf %52 : vector<4x216xf32> to vector<4x216xbf16>
    %cst_39 = arith.constant 0.000000e+00 : bf16
    %54 = vector.broadcast %cst_39 : bf16 to vector<4x1xbf16>
    %c0_40 = arith.constant 0 : index
    %c0_41 = arith.constant 0 : index
    %55 = vector.load %arg16[%c0_40, %c0_41] : memref<4x234xbf16, #tpu.memory_space<vmem>>, vector<4x1xbf16>
    tpu.vector_store %arg16[%c0_40, %c0_41], %54 {strides = array<i32>} : memref<4x234xbf16, #tpu.memory_space<vmem>>, vector<4x1xbf16>,
    %c0_42 = arith.constant 0 : index
    %c1_43 = arith.constant 1 : index
    %56 = vector.load %arg16[%c0_42, %c1_43] : memref<4x234xbf16, #tpu.memory_space<vmem>>, vector<4x216xbf16>
    tpu.vector_store %arg16[%c0_42, %c1_43], %53 {strides = array<i32>} : memref<4x234xbf16, #tpu.memory_space<vmem>>, vector<4x216xbf16>,
    %cst_44 = arith.constant 0.000000e+00 : bf16
    %57 = vector.broadcast %cst_44 : bf16 to vector<4x17xbf16>
    %c0_45 = arith.constant 0 : index
    %c217 = arith.constant 217 : index
    %58 = vector.load %arg16[%c0_45, %c217] : memref<4x234xbf16, #tpu.memory_space<vmem>>, vector<4x17xbf16>
    tpu.vector_store %arg16[%c0_45, %c217], %57 {strides = array<i32>} : memref<4x234xbf16, #tpu.memory_space<vmem>>, vector<4x17xbf16>,
    %c0_46 = arith.constant 0 : index
    %c18_47 = arith.constant 18 : index
    %59 = vector.load %arg18[%c0_46, %c18_47] : memref<8x270xbf16, #tpu.memory_space<vmem>>, vector<8x180xbf16>
    %c0_48 = arith.constant 0 : index
    %c0_49 = arith.constant 0 : index
    %60 = vector.load %arg15[%c0_48, %c0_49] : memref<144x216xbf16, #tpu.memory_space<vmem>>, vector<8x180xbf16>
    tpu.vector_store %arg15[%c0_48, %c0_49], %59 {strides = array<i32>} : memref<144x216xbf16, #tpu.memory_space<vmem>>, vector<8x180xbf16>,
    %c0_50 = arith.constant 0 : index
    %c19_51 = arith.constant 19 : index
    %61 = vector.load %arg18[%c0_50, %c19_51] : memref<8x270xbf16, #tpu.memory_space<vmem>>, vector<8x180xbf16>
    %c8_52 = arith.constant 8 : index
    %c0_53 = arith.constant 0 : index
    %62 = vector.load %arg15[%c8_52, %c0_53] : memref<144x216xbf16, #tpu.memory_space<vmem>>, vector<8x180xbf16>
    tpu.vector_store %arg15[%c8_52, %c0_53], %61 {strides = array<i32>} : memref<144x216xbf16, #tpu.memory_space<vmem>>, vector<8x180xbf16>,
    %c0_54 = arith.constant 0 : index
    %c20_55 = arith.constant 20 : index
    %63 = vector.load %arg18[%c0_54, %c20_55] : memref<8x270xbf16, #tpu.memory_space<vmem>>, vector<8x180xbf16>
    %c16_56 = arith.constant 16 : index
    %c0_57 = arith.constant 0 : index
    %64 = vector.load %arg15[%c16_56, %c0_57] : memref<144x216xbf16, #tpu.memory_space<vmem>>, vector<8x180xbf16>
    tpu.vector_store %arg15[%c16_56, %c0_57], %63 {strides = array<i32>} : memref<144x216xbf16, #tpu.memory_space<vmem>>, vector<8x180xbf16>,
    %c0_58 = arith.constant 0 : index
    %c36_59 = arith.constant 36 : index
    %65 = vector.load %arg18[%c0_58, %c36_59] : memref<8x270xbf16, #tpu.memory_space<vmem>>, vector<8x180xbf16>
    %c24_60 = arith.constant 24 : index
    %c0_61 = arith.constant 0 : index
    %66 = vector.load %arg15[%c24_60, %c0_61] : memref<144x216xbf16, #tpu.memory_space<vmem>>, vector<8x180xbf16>
    tpu.vector_store %arg15[%c24_60, %c0_61], %65 {strides = array<i32>} : memref<144x216xbf16, #tpu.memory_space<vmem>>, vector<8x180xbf16>,
    %c0_62 = arith.constant 0 : index
    %c37_63 = arith.constant 37 : index
    %67 = vector.load %arg18[%c0_62, %c37_63] : memref<8x270xbf16, #tpu.memory_space<vmem>>, vector<8x180xbf16>
    %c32_64 = arith.constant 32 : index
    %c0_65 = arith.constant 0 : index
    %68 = vector.load %arg15[%c32_64, %c0_65] : memref<144x216xbf16, #tpu.memory_space<vmem>>, vector<8x180xbf16>
    tpu.vector_store %arg15[%c32_64, %c0_65], %67 {strides = array<i32>} : memref<144x216xbf16, #tpu.memory_space<vmem>>, vector<8x180xbf16>,
    %c0_66 = arith.constant 0 : index
    %c38_67 = arith.constant 38 : index
    %69 = vector.load %arg18[%c0_66, %c38_67] : memref<8x270xbf16, #tpu.memory_space<vmem>>, vector<8x180xbf16>
    %c40_68 = arith.constant 40 : index
    %c0_69 = arith.constant 0 : index
    %70 = vector.load %arg15[%c40_68, %c0_69] : memref<144x216xbf16, #tpu.memory_space<vmem>>, vector<8x180xbf16>
    tpu.vector_store %arg15[%c40_68, %c0_69], %69 {strides = array<i32>} : memref<144x216xbf16, #tpu.memory_space<vmem>>, vector<8x180xbf16>,
    %c0_70 = arith.constant 0 : index
    %c54 = arith.constant 54 : index
    %71 = vector.load %arg18[%c0_70, %c54] : memref<8x270xbf16, #tpu.memory_space<vmem>>, vector<8x180xbf16>
    %c48_71 = arith.constant 48 : index
    %c0_72 = arith.constant 0 : index
    %72 = vector.load %arg15[%c48_71, %c0_72] : memref<144x216xbf16, #tpu.memory_space<vmem>>, vector<8x180xbf16>
    tpu.vector_store %arg15[%c48_71, %c0_72], %71 {strides = array<i32>} : memref<144x216xbf16, #tpu.memory_space<vmem>>, vector<8x180xbf16>,
    %c0_73 = arith.constant 0 : index
    %c55 = arith.constant 55 : index
    %73 = vector.load %arg18[%c0_73, %c55] : memref<8x270xbf16, #tpu.memory_space<vmem>>, vector<8x180xbf16>
    %c56_74 = arith.constant 56 : index
    %c0_75 = arith.constant 0 : index
    %74 = vector.load %arg15[%c56_74, %c0_75] : memref<144x216xbf16, #tpu.memory_space<vmem>>, vector<8x180xbf16>
    tpu.vector_store %arg15[%c56_74, %c0_75], %73 {strides = array<i32>} : memref<144x216xbf16, #tpu.memory_space<vmem>>, vector<8x180xbf16>,
    %c0_76 = arith.constant 0 : index
    %c56_77 = arith.constant 56 : index
    %75 = vector.load %arg18[%c0_76, %c56_77] : memref<8x270xbf16, #tpu.memory_space<vmem>>, vector<8x180xbf16>
    %c64_78 = arith.constant 64 : index
    %c0_79 = arith.constant 0 : index
    %76 = vector.load %arg15[%c64_78, %c0_79] : memref<144x216xbf16, #tpu.memory_space<vmem>>, vector<8x180xbf16>
    tpu.vector_store %arg15[%c64_78, %c0_79], %75 {strides = array<i32>} : memref<144x216xbf16, #tpu.memory_space<vmem>>, vector<8x180xbf16>,
    %c0_80 = arith.constant 0 : index
    %c0_81 = arith.constant 0 : index
    %77 = vector.load %arg16[%c0_80, %c0_81] : memref<4x234xbf16, #tpu.memory_space<vmem>>, vector<4x180xbf16>
    %c72 = arith.constant 72 : index
    %c0_82 = arith.constant 0 : index
    %78 = vector.load %arg15[%c72, %c0_82] : memref<144x216xbf16, #tpu.memory_space<vmem>>, vector<4x180xbf16>
    tpu.vector_store %arg15[%c72, %c0_82], %77 {strides = array<i32>} : memref<144x216xbf16, #tpu.memory_space<vmem>>, vector<4x180xbf16>,
    %c0_83 = arith.constant 0 : index
    %c1_84 = arith.constant 1 : index
    %79 = vector.load %arg16[%c0_83, %c1_84] : memref<4x234xbf16, #tpu.memory_space<vmem>>, vector<4x180xbf16>
    %c76 = arith.constant 76 : index
    %c0_85 = arith.constant 0 : index
    %80 = vector.load %arg15[%c76, %c0_85] : memref<144x216xbf16, #tpu.memory_space<vmem>>, vector<4x180xbf16>
    tpu.vector_store %arg15[%c76, %c0_85], %79 {strides = array<i32>} : memref<144x216xbf16, #tpu.memory_space<vmem>>, vector<4x180xbf16>,
    %c0_86 = arith.constant 0 : index
    %c2_87 = arith.constant 2 : index
    %81 = vector.load %arg16[%c0_86, %c2_87] : memref<4x234xbf16, #tpu.memory_space<vmem>>, vector<4x180xbf16>
    %c80 = arith.constant 80 : index
    %c0_88 = arith.constant 0 : index
    %82 = vector.load %arg15[%c80, %c0_88] : memref<144x216xbf16, #tpu.memory_space<vmem>>, vector<4x180xbf16>
    tpu.vector_store %arg15[%c80, %c0_88], %81 {strides = array<i32>} : memref<144x216xbf16, #tpu.memory_space<vmem>>, vector<4x180xbf16>,
    %c0_89 = arith.constant 0 : index
    %c18_90 = arith.constant 18 : index
    %83 = vector.load %arg16[%c0_89, %c18_90] : memref<4x234xbf16, #tpu.memory_space<vmem>>, vector<4x180xbf16>
    %c84 = arith.constant 84 : index
    %c0_91 = arith.constant 0 : index
    %84 = vector.load %arg15[%c84, %c0_91] : memref<144x216xbf16, #tpu.memory_space<vmem>>, vector<4x180xbf16>
    tpu.vector_store %arg15[%c84, %c0_91], %83 {strides = array<i32>} : memref<144x216xbf16, #tpu.memory_space<vmem>>, vector<4x180xbf16>,
    %c0_92 = arith.constant 0 : index
    %c19_93 = arith.constant 19 : index
    %85 = vector.load %arg16[%c0_92, %c19_93] : memref<4x234xbf16, #tpu.memory_space<vmem>>, vector<4x180xbf16>
    %c88 = arith.constant 88 : index
    %c0_94 = arith.constant 0 : index
    %86 = vector.load %arg15[%c88, %c0_94] : memref<144x216xbf16, #tpu.memory_space<vmem>>, vector<4x180xbf16>
    tpu.vector_store %arg15[%c88, %c0_94], %85 {strides = array<i32>} : memref<144x216xbf16, #tpu.memory_space<vmem>>, vector<4x180xbf16>,
    %c0_95 = arith.constant 0 : index
    %c20_96 = arith.constant 20 : index
    %87 = vector.load %arg16[%c0_95, %c20_96] : memref<4x234xbf16, #tpu.memory_space<vmem>>, vector<4x180xbf16>
    %c92 = arith.constant 92 : index
    %c0_97 = arith.constant 0 : index
    %88 = vector.load %arg15[%c92, %c0_97] : memref<144x216xbf16, #tpu.memory_space<vmem>>, vector<4x180xbf16>
    tpu.vector_store %arg15[%c92, %c0_97], %87 {strides = array<i32>} : memref<144x216xbf16, #tpu.memory_space<vmem>>, vector<4x180xbf16>,
    %c0_98 = arith.constant 0 : index
    %c36_99 = arith.constant 36 : index
    %89 = vector.load %arg16[%c0_98, %c36_99] : memref<4x234xbf16, #tpu.memory_space<vmem>>, vector<4x180xbf16>
    %c96 = arith.constant 96 : index
    %c0_100 = arith.constant 0 : index
    %90 = vector.load %arg15[%c96, %c0_100] : memref<144x216xbf16, #tpu.memory_space<vmem>>, vector<4x180xbf16>
    tpu.vector_store %arg15[%c96, %c0_100], %89 {strides = array<i32>} : memref<144x216xbf16, #tpu.memory_space<vmem>>, vector<4x180xbf16>,
    %c0_101 = arith.constant 0 : index
    %c37_102 = arith.constant 37 : index
    %91 = vector.load %arg16[%c0_101, %c37_102] : memref<4x234xbf16, #tpu.memory_space<vmem>>, vector<4x180xbf16>
    %c100 = arith.constant 100 : index
    %c0_103 = arith.constant 0 : index
    %92 = vector.load %arg15[%c100, %c0_103] : memref<144x216xbf16, #tpu.memory_space<vmem>>, vector<4x180xbf16>
    tpu.vector_store %arg15[%c100, %c0_103], %91 {strides = array<i32>} : memref<144x216xbf16, #tpu.memory_space<vmem>>, vector<4x180xbf16>,
    %c0_104 = arith.constant 0 : index
    %c38_105 = arith.constant 38 : index
    %93 = vector.load %arg16[%c0_104, %c38_105] : memref<4x234xbf16, #tpu.memory_space<vmem>>, vector<4x180xbf16>
    %c104 = arith.constant 104 : index
    %c0_106 = arith.constant 0 : index
    %94 = vector.load %arg15[%c104, %c0_106] : memref<144x216xbf16, #tpu.memory_space<vmem>>, vector<4x180xbf16>
    tpu.vector_store %arg15[%c104, %c0_106], %93 {strides = array<i32>} : memref<144x216xbf16, #tpu.memory_space<vmem>>, vector<4x180xbf16>,
    %c0_107 = arith.constant 0 : index
    %c0_108 = arith.constant 0 : index
    %95 = vector.load %arg8[%c0_107, %c0_108] : memref<4x108xbf16, #tpu.memory_space<vmem>>, vector<4x108xbf16>
    %c0_109 = arith.constant 0 : index
    %c0_110 = arith.constant 0 : index
    %96 = vector.load %arg15[%c0_109, %c0_110] : memref<144x216xbf16, #tpu.memory_space<vmem>>, vector<108x180xbf16>
    %cst_111 = arith.constant dense<0.000000e+00> : vector<4x180xf32>
    %97 = tpu.matmul %95, %96, %cst_111 {dimension_numbers = #tpu.dot_dimension_numbers<[1], [0], [0], [1], [0, 0, 1, 1], [], []>} : vector<4x108xbf16>, vector<108x180xbf16>, vector<4x180xf32> -> vector<4x180xf32>
    %c0_112 = arith.constant 0 : index
    %c0_113 = arith.constant 0 : index
    %98 = vector.load %arg9[%c0_112, %c0_113] : memref<4x1xf32, #tpu.memory_space<vmem>>, vector<4x1xf32>
    %99 = vector.broadcast %98 : vector<4x1xf32> to vector<4x180xf32>
    %100 = arith.addf %97, %99 : vector<4x180xf32>
    %c0_114 = arith.constant 0 : index
    %c0_115 = arith.constant 0 : index
    %101 = memref.load %arg10[%c0_114, %c0_115] : memref<1x1xf32, #tpu.memory_space<smem>>
    %cst_116 = arith.constant 0.000000e+00 : f32
    %102 = vector.broadcast %cst_116 : f32 to vector<4x180xf32>
    %103 = arith.cmpf ogt, %100, %102 : vector<4x180xf32>
    %104 = vector.broadcast %101 : f32 to vector<4x180xf32>
    %105 = arith.mulf %104, %100 : vector<4x180xf32>
    %106 = arith.select %103, %100, %105 : vector<4x180xi1>, vector<4x180xf32>
    %c1_i32 = arith.constant 1 : i32
    %107 = arith.subi %c1_i32, %0 : i32
    %c0_i32_117 = arith.constant 0 : i32
    %108 = arith.maxsi %107, %c0_i32_117 : i32
    %c17_i32 = arith.constant 17 : i32
    %109 = arith.subi %c17_i32, %0 : i32
    %c10_i32 = arith.constant 10 : i32
    %110 = arith.minsi %109, %c10_i32 : i32
    %111 = vector.extract_strided_slice %1 {offsets = [0, 0], sizes = [1, 180], strides = [1, 1]} : vector<1x216xi32> to vector<1x180xi32>
    %112 = vector.extract_strided_slice %4 {offsets = [0, 0], sizes = [1, 180], strides = [1, 1]} : vector<1x216xi1> to vector<1x180xi1>
    %113 = vector.broadcast %108 : i32 to vector<1x180xi32>
    %114 = arith.cmpi sge, %111, %113 : vector<1x180xi32>
    %115 = arith.andi %112, %114 : vector<1x180xi1>
    %116 = vector.broadcast %110 : i32 to vector<1x180xi32>
    %117 = arith.cmpi slt, %111, %116 : vector<1x180xi32>
    %118 = arith.andi %115, %117 : vector<1x180xi1>
    %cst_118 = arith.constant 0.000000e+00 : f32
    %119 = vector.shape_cast %118 : vector<1x180xi1> to vector<1x180xi1>
    %120 = vector.broadcast %119 : vector<1x180xi1> to vector<4x180xi1>
    %121 = vector.broadcast %cst_118 : f32 to vector<4x180xf32>
    %122 = arith.select %120, %106, %121 : vector<4x180xi1>, vector<4x180xf32>
    %123 = arith.truncf %122 : vector<4x180xf32> to vector<4x180xbf16>
    %cst_119 = arith.constant 0.000000e+00 : bf16
    %124 = vector.broadcast %cst_119 : bf16 to vector<4x1xbf16>
    %c0_120 = arith.constant 0 : index
    %c0_121 = arith.constant 0 : index
    %125 = vector.load %arg17[%c0_120, %c0_121] : memref<4x198xbf16, #tpu.memory_space<vmem>>, vector<4x1xbf16>
    tpu.vector_store %arg17[%c0_120, %c0_121], %124 {strides = array<i32>} : memref<4x198xbf16, #tpu.memory_space<vmem>>, vector<4x1xbf16>,
    %c0_122 = arith.constant 0 : index
    %c1_123 = arith.constant 1 : index
    %126 = vector.load %arg17[%c0_122, %c1_123] : memref<4x198xbf16, #tpu.memory_space<vmem>>, vector<4x180xbf16>
    tpu.vector_store %arg17[%c0_122, %c1_123], %123 {strides = array<i32>} : memref<4x198xbf16, #tpu.memory_space<vmem>>, vector<4x180xbf16>,
    %cst_124 = arith.constant 0.000000e+00 : bf16
    %127 = vector.broadcast %cst_124 : bf16 to vector<4x17xbf16>
    %c0_125 = arith.constant 0 : index
    %c181 = arith.constant 181 : index
    %128 = vector.load %arg17[%c0_125, %c181] : memref<4x198xbf16, #tpu.memory_space<vmem>>, vector<4x17xbf16>
    tpu.vector_store %arg17[%c0_125, %c181], %127 {strides = array<i32>} : memref<4x198xbf16, #tpu.memory_space<vmem>>, vector<4x17xbf16>,
    %c0_126 = arith.constant 0 : index
    %c36_127 = arith.constant 36 : index
    %129 = vector.load %arg18[%c0_126, %c36_127] : memref<8x270xbf16, #tpu.memory_space<vmem>>, vector<8x144xbf16>
    %c0_128 = arith.constant 0 : index
    %c0_129 = arith.constant 0 : index
    %130 = vector.load %arg15[%c0_128, %c0_129] : memref<144x216xbf16, #tpu.memory_space<vmem>>, vector<8x144xbf16>
    tpu.vector_store %arg15[%c0_128, %c0_129], %129 {strides = array<i32>} : memref<144x216xbf16, #tpu.memory_space<vmem>>, vector<8x144xbf16>,
    %c0_130 = arith.constant 0 : index
    %c37_131 = arith.constant 37 : index
    %131 = vector.load %arg18[%c0_130, %c37_131] : memref<8x270xbf16, #tpu.memory_space<vmem>>, vector<8x144xbf16>
    %c8_132 = arith.constant 8 : index
    %c0_133 = arith.constant 0 : index
    %132 = vector.load %arg15[%c8_132, %c0_133] : memref<144x216xbf16, #tpu.memory_space<vmem>>, vector<8x144xbf16>
    tpu.vector_store %arg15[%c8_132, %c0_133], %131 {strides = array<i32>} : memref<144x216xbf16, #tpu.memory_space<vmem>>, vector<8x144xbf16>,
    %c0_134 = arith.constant 0 : index
    %c38_135 = arith.constant 38 : index
    %133 = vector.load %arg18[%c0_134, %c38_135] : memref<8x270xbf16, #tpu.memory_space<vmem>>, vector<8x144xbf16>
    %c16_136 = arith.constant 16 : index
    %c0_137 = arith.constant 0 : index
    %134 = vector.load %arg15[%c16_136, %c0_137] : memref<144x216xbf16, #tpu.memory_space<vmem>>, vector<8x144xbf16>
    tpu.vector_store %arg15[%c16_136, %c0_137], %133 {strides = array<i32>} : memref<144x216xbf16, #tpu.memory_space<vmem>>, vector<8x144xbf16>,
    %c0_138 = arith.constant 0 : index
    %c54_139 = arith.constant 54 : index
    %135 = vector.load %arg18[%c0_138, %c54_139] : memref<8x270xbf16, #tpu.memory_space<vmem>>, vector<8x144xbf16>
    %c24_140 = arith.constant 24 : index
    %c0_141 = arith.constant 0 : index
    %136 = vector.load %arg15[%c24_140, %c0_141] : memref<144x216xbf16, #tpu.memory_space<vmem>>, vector<8x144xbf16>
    tpu.vector_store %arg15[%c24_140, %c0_141], %135 {strides = array<i32>} : memref<144x216xbf16, #tpu.memory_space<vmem>>, vector<8x144xbf16>,
    %c0_142 = arith.constant 0 : index
    %c55_143 = arith.constant 55 : index
    %137 = vector.load %arg18[%c0_142, %c55_143] : memref<8x270xbf16, #tpu.memory_space<vmem>>, vector<8x144xbf16>
    %c32_144 = arith.constant 32 : index
    %c0_145 = arith.constant 0 : index
    %138 = vector.load %arg15[%c32_144, %c0_145] : memref<144x216xbf16, #tpu.memory_space<vmem>>, vector<8x144xbf16>
    tpu.vector_store %arg15[%c32_144, %c0_145], %137 {strides = array<i32>} : memref<144x216xbf16, #tpu.memory_space<vmem>>, vector<8x144xbf16>,
    %c0_146 = arith.constant 0 : index
    %c56_147 = arith.constant 56 : index
    %139 = vector.load %arg18[%c0_146, %c56_147] : memref<8x270xbf16, #tpu.memory_space<vmem>>, vector<8x144xbf16>
    %c40_148 = arith.constant 40 : index
    %c0_149 = arith.constant 0 : index
    %140 = vector.load %arg15[%c40_148, %c0_149] : memref<144x216xbf16, #tpu.memory_space<vmem>>, vector<8x144xbf16>
    tpu.vector_store %arg15[%c40_148, %c0_149], %139 {strides = array<i32>} : memref<144x216xbf16, #tpu.memory_space<vmem>>, vector<8x144xbf16>,
    %c0_150 = arith.constant 0 : index
    %c72_151 = arith.constant 72 : index
    %141 = vector.load %arg18[%c0_150, %c72_151] : memref<8x270xbf16, #tpu.memory_space<vmem>>, vector<8x144xbf16>
    %c48_152 = arith.constant 48 : index
    %c0_153 = arith.constant 0 : index
    %142 = vector.load %arg15[%c48_152, %c0_153] : memref<144x216xbf16, #tpu.memory_space<vmem>>, vector<8x144xbf16>
    tpu.vector_store %arg15[%c48_152, %c0_153], %141 {strides = array<i32>} : memref<144x216xbf16, #tpu.memory_space<vmem>>, vector<8x144xbf16>,
    %c0_154 = arith.constant 0 : index
    %c73 = arith.constant 73 : index
    %143 = vector.load %arg18[%c0_154, %c73] : memref<8x270xbf16, #tpu.memory_space<vmem>>, vector<8x144xbf16>
    %c56_155 = arith.constant 56 : index
    %c0_156 = arith.constant 0 : index
    %144 = vector.load %arg15[%c56_155, %c0_156] : memref<144x216xbf16, #tpu.memory_space<vmem>>, vector<8x144xbf16>
    tpu.vector_store %arg15[%c56_155, %c0_156], %143 {strides = array<i32>} : memref<144x216xbf16, #tpu.memory_space<vmem>>, vector<8x144xbf16>,
    %c0_157 = arith.constant 0 : index
    %c74 = arith.constant 74 : index
    %145 = vector.load %arg18[%c0_157, %c74] : memref<8x270xbf16, #tpu.memory_space<vmem>>, vector<8x144xbf16>
    %c64_158 = arith.constant 64 : index
    %c0_159 = arith.constant 0 : index
    %146 = vector.load %arg15[%c64_158, %c0_159] : memref<144x216xbf16, #tpu.memory_space<vmem>>, vector<8x144xbf16>
    tpu.vector_store %arg15[%c64_158, %c0_159], %145 {strides = array<i32>} : memref<144x216xbf16, #tpu.memory_space<vmem>>, vector<8x144xbf16>,
    %c0_160 = arith.constant 0 : index
    %c18_161 = arith.constant 18 : index
    %147 = vector.load %arg16[%c0_160, %c18_161] : memref<4x234xbf16, #tpu.memory_space<vmem>>, vector<4x144xbf16>
    %c72_162 = arith.constant 72 : index
    %c0_163 = arith.constant 0 : index
    %148 = vector.load %arg15[%c72_162, %c0_163] : memref<144x216xbf16, #tpu.memory_space<vmem>>, vector<4x144xbf16>
    tpu.vector_store %arg15[%c72_162, %c0_163], %147 {strides = array<i32>} : memref<144x216xbf16, #tpu.memory_space<vmem>>, vector<4x144xbf16>,
    %c0_164 = arith.constant 0 : index
    %c19_165 = arith.constant 19 : index
    %149 = vector.load %arg16[%c0_164, %c19_165] : memref<4x234xbf16, #tpu.memory_space<vmem>>, vector<4x144xbf16>
    %c76_166 = arith.constant 76 : index
    %c0_167 = arith.constant 0 : index
    %150 = vector.load %arg15[%c76_166, %c0_167] : memref<144x216xbf16, #tpu.memory_space<vmem>>, vector<4x144xbf16>
    tpu.vector_store %arg15[%c76_166, %c0_167], %149 {strides = array<i32>} : memref<144x216xbf16, #tpu.memory_space<vmem>>, vector<4x144xbf16>,
    %c0_168 = arith.constant 0 : index
    %c20_169 = arith.constant 20 : index
    %151 = vector.load %arg16[%c0_168, %c20_169] : memref<4x234xbf16, #tpu.memory_space<vmem>>, vector<4x144xbf16>
    %c80_170 = arith.constant 80 : index
    %c0_171 = arith.constant 0 : index
    %152 = vector.load %arg15[%c80_170, %c0_171] : memref<144x216xbf16, #tpu.memory_space<vmem>>, vector<4x144xbf16>
    tpu.vector_store %arg15[%c80_170, %c0_171], %151 {strides = array<i32>} : memref<144x216xbf16, #tpu.memory_space<vmem>>, vector<4x144xbf16>,
    %c0_172 = arith.constant 0 : index
    %c36_173 = arith.constant 36 : index
    %153 = vector.load %arg16[%c0_172, %c36_173] : memref<4x234xbf16, #tpu.memory_space<vmem>>, vector<4x144xbf16>
    %c84_174 = arith.constant 84 : index
    %c0_175 = arith.constant 0 : index
    %154 = vector.load %arg15[%c84_174, %c0_175] : memref<144x216xbf16, #tpu.memory_space<vmem>>, vector<4x144xbf16>
    tpu.vector_store %arg15[%c84_174, %c0_175], %153 {strides = array<i32>} : memref<144x216xbf16, #tpu.memory_space<vmem>>, vector<4x144xbf16>,
    %c0_176 = arith.constant 0 : index
    %c37_177 = arith.constant 37 : index
    %155 = vector.load %arg16[%c0_176, %c37_177] : memref<4x234xbf16, #tpu.memory_space<vmem>>, vector<4x144xbf16>
    %c88_178 = arith.constant 88 : index
    %c0_179 = arith.constant 0 : index
    %156 = vector.load %arg15[%c88_178, %c0_179] : memref<144x216xbf16, #tpu.memory_space<vmem>>, vector<4x144xbf16>
    tpu.vector_store %arg15[%c88_178, %c0_179], %155 {strides = array<i32>} : memref<144x216xbf16, #tpu.memory_space<vmem>>, vector<4x144xbf16>,
    %c0_180 = arith.constant 0 : index
    %c38_181 = arith.constant 38 : index
    %157 = vector.load %arg16[%c0_180, %c38_181] : memref<4x234xbf16, #tpu.memory_space<vmem>>, vector<4x144xbf16>
    %c92_182 = arith.constant 92 : index
    %c0_183 = arith.constant 0 : index
    %158 = vector.load %arg15[%c92_182, %c0_183] : memref<144x216xbf16, #tpu.memory_space<vmem>>, vector<4x144xbf16>
    tpu.vector_store %arg15[%c92_182, %c0_183], %157 {strides = array<i32>} : memref<144x216xbf16, #tpu.memory_space<vmem>>, vector<4x144xbf16>,
    %c0_184 = arith.constant 0 : index
    %c54_185 = arith.constant 54 : index
    %159 = vector.load %arg16[%c0_184, %c54_185] : memref<4x234xbf16, #tpu.memory_space<vmem>>, vector<4x144xbf16>
    %c96_186 = arith.constant 96 : index
    %c0_187 = arith.constant 0 : index
    %160 = vector.load %arg15[%c96_186, %c0_187] : memref<144x216xbf16, #tpu.memory_space<vmem>>, vector<4x144xbf16>
    tpu.vector_store %arg15[%c96_186, %c0_187], %159 {strides = array<i32>} : memref<144x216xbf16, #tpu.memory_space<vmem>>, vector<4x144xbf16>,
    %c0_188 = arith.constant 0 : index
    %c55_189 = arith.constant 55 : index
    %161 = vector.load %arg16[%c0_188, %c55_189] : memref<4x234xbf16, #tpu.memory_space<vmem>>, vector<4x144xbf16>
    %c100_190 = arith.constant 100 : index
    %c0_191 = arith.constant 0 : index
    %162 = vector.load %arg15[%c100_190, %c0_191] : memref<144x216xbf16, #tpu.memory_space<vmem>>, vector<4x144xbf16>
    tpu.vector_store %arg15[%c100_190, %c0_191], %161 {strides = array<i32>} : memref<144x216xbf16, #tpu.memory_space<vmem>>, vector<4x144xbf16>,
    %c0_192 = arith.constant 0 : index
    %c56_193 = arith.constant 56 : index
    %163 = vector.load %arg16[%c0_192, %c56_193] : memref<4x234xbf16, #tpu.memory_space<vmem>>, vector<4x144xbf16>
    %c104_194 = arith.constant 104 : index
    %c0_195 = arith.constant 0 : index
    %164 = vector.load %arg15[%c104_194, %c0_195] : memref<144x216xbf16, #tpu.memory_space<vmem>>, vector<4x144xbf16>
    tpu.vector_store %arg15[%c104_194, %c0_195], %163 {strides = array<i32>} : memref<144x216xbf16, #tpu.memory_space<vmem>>, vector<4x144xbf16>,
    %c0_196 = arith.constant 0 : index
    %c0_197 = arith.constant 0 : index
    %165 = vector.load %arg17[%c0_196, %c0_197] : memref<4x198xbf16, #tpu.memory_space<vmem>>, vector<4x144xbf16>
    %c108 = arith.constant 108 : index
    %c0_198 = arith.constant 0 : index
    %166 = vector.load %arg15[%c108, %c0_198] : memref<144x216xbf16, #tpu.memory_space<vmem>>, vector<4x144xbf16>
    tpu.vector_store %arg15[%c108, %c0_198], %165 {strides = array<i32>} : memref<144x216xbf16, #tpu.memory_space<vmem>>, vector<4x144xbf16>,
    %c0_199 = arith.constant 0 : index
    %c1_200 = arith.constant 1 : index
    %167 = vector.load %arg17[%c0_199, %c1_200] : memref<4x198xbf16, #tpu.memory_space<vmem>>, vector<4x144xbf16>
    %c112 = arith.constant 112 : index
    %c0_201 = arith.constant 0 : index
    %168 = vector.load %arg15[%c112, %c0_201] : memref<144x216xbf16, #tpu.memory_space<vmem>>, vector<4x144xbf16>
    tpu.vector_store %arg15[%c112, %c0_201], %167 {strides = array<i32>} : memref<144x216xbf16, #tpu.memory_space<vmem>>, vector<4x144xbf16>,
    %c0_202 = arith.constant 0 : index
    %c2_203 = arith.constant 2 : index
    %169 = vector.load %arg17[%c0_202, %c2_203] : memref<4x198xbf16, #tpu.memory_space<vmem>>, vector<4x144xbf16>
    %c116 = arith.constant 116 : index
    %c0_204 = arith.constant 0 : index
    %170 = vector.load %arg15[%c116, %c0_204] : memref<144x216xbf16, #tpu.memory_space<vmem>>, vector<4x144xbf16>
    tpu.vector_store %arg15[%c116, %c0_204], %169 {strides = array<i32>} : memref<144x216xbf16, #tpu.memory_space<vmem>>, vector<4x144xbf16>,
    %c0_205 = arith.constant 0 : index
    %c18_206 = arith.constant 18 : index
    %171 = vector.load %arg17[%c0_205, %c18_206] : memref<4x198xbf16, #tpu.memory_space<vmem>>, vector<4x144xbf16>
    %c120 = arith.constant 120 : index
    %c0_207 = arith.constant 0 : index
    %172 = vector.load %arg15[%c120, %c0_207] : memref<144x216xbf16, #tpu.memory_space<vmem>>, vector<4x144xbf16>
    tpu.vector_store %arg15[%c120, %c0_207], %171 {strides = array<i32>} : memref<144x216xbf16, #tpu.memory_space<vmem>>, vector<4x144xbf16>,
    %c0_208 = arith.constant 0 : index
    %c19_209 = arith.constant 19 : index
    %173 = vector.load %arg17[%c0_208, %c19_209] : memref<4x198xbf16, #tpu.memory_space<vmem>>, vector<4x144xbf16>
    %c124 = arith.constant 124 : index
    %c0_210 = arith.constant 0 : index
    %174 = vector.load %arg15[%c124, %c0_210] : memref<144x216xbf16, #tpu.memory_space<vmem>>, vector<4x144xbf16>
    tpu.vector_store %arg15[%c124, %c0_210], %173 {strides = array<i32>} : memref<144x216xbf16, #tpu.memory_space<vmem>>, vector<4x144xbf16>,
    %c0_211 = arith.constant 0 : index
    %c20_212 = arith.constant 20 : index
    %175 = vector.load %arg17[%c0_211, %c20_212] : memref<4x198xbf16, #tpu.memory_space<vmem>>, vector<4x144xbf16>
    %c128 = arith.constant 128 : index
    %c0_213 = arith.constant 0 : index
    %176 = vector.load %arg15[%c128, %c0_213] : memref<144x216xbf16, #tpu.memory_space<vmem>>, vector<4x144xbf16>
    tpu.vector_store %arg15[%c128, %c0_213], %175 {strides = array<i32>} : memref<144x216xbf16, #tpu.memory_space<vmem>>, vector<4x144xbf16>,
    %c0_214 = arith.constant 0 : index
    %c36_215 = arith.constant 36 : index
    %177 = vector.load %arg17[%c0_214, %c36_215] : memref<4x198xbf16, #tpu.memory_space<vmem>>, vector<4x144xbf16>
    %c132 = arith.constant 132 : index
    %c0_216 = arith.constant 0 : index
    %178 = vector.load %arg15[%c132, %c0_216] : memref<144x216xbf16, #tpu.memory_space<vmem>>, vector<4x144xbf16>
    tpu.vector_store %arg15[%c132, %c0_216], %177 {strides = array<i32>} : memref<144x216xbf16, #tpu.memory_space<vmem>>, vector<4x144xbf16>,
    %c0_217 = arith.constant 0 : index
    %c37_218 = arith.constant 37 : index
    %179 = vector.load %arg17[%c0_217, %c37_218] : memref<4x198xbf16, #tpu.memory_space<vmem>>, vector<4x144xbf16>
    %c136 = arith.constant 136 : index
    %c0_219 = arith.constant 0 : index
    %180 = vector.load %arg15[%c136, %c0_219] : memref<144x216xbf16, #tpu.memory_space<vmem>>, vector<4x144xbf16>
    tpu.vector_store %arg15[%c136, %c0_219], %179 {strides = array<i32>} : memref<144x216xbf16, #tpu.memory_space<vmem>>, vector<4x144xbf16>,
    %c0_220 = arith.constant 0 : index
    %c38_221 = arith.constant 38 : index
    %181 = vector.load %arg17[%c0_220, %c38_221] : memref<4x198xbf16, #tpu.memory_space<vmem>>, vector<4x144xbf16>
    %c140 = arith.constant 140 : index
    %c0_222 = arith.constant 0 : index
    %182 = vector.load %arg15[%c140, %c0_222] : memref<144x216xbf16, #tpu.memory_space<vmem>>, vector<4x144xbf16>
    tpu.vector_store %arg15[%c140, %c0_222], %181 {strides = array<i32>} : memref<144x216xbf16, #tpu.memory_space<vmem>>, vector<4x144xbf16>,
    %c0_223 = arith.constant 0 : index
    %c0_224 = arith.constant 0 : index
    %183 = vector.load %arg11[%c0_223, %c0_224] : memref<8x144xbf16, #tpu.memory_space<vmem>>, vector<8x144xbf16>
    %c0_225 = arith.constant 0 : index
    %c0_226 = arith.constant 0 : index
    %184 = vector.load %arg15[%c0_225, %c0_226] : memref<144x216xbf16, #tpu.memory_space<vmem>>, vector<144x144xbf16>
    %cst_227 = arith.constant dense<0.000000e+00> : vector<8x144xf32>
    %185 = tpu.matmul %183, %184, %cst_227 {dimension_numbers = #tpu.dot_dimension_numbers<[1], [0], [0], [1], [0, 0, 1, 1], [], []>} : vector<8x144xbf16>, vector<144x144xbf16>, vector<8x144xf32> -> vector<8x144xf32>
    %c0_228 = arith.constant 0 : index
    %c0_229 = arith.constant 0 : index
    %186 = vector.load %arg12[%c0_228, %c0_229] : memref<8x1xf32, #tpu.memory_space<vmem>>, vector<8x1xf32>
    %187 = vector.broadcast %186 : vector<8x1xf32> to vector<8x144xf32>
    %188 = arith.addf %185, %187 : vector<8x144xf32>
    %c0_230 = arith.constant 0 : index
    %c0_231 = arith.constant 0 : index
    %189 = memref.load %arg13[%c0_230, %c0_231] : memref<1x1xf32, #tpu.memory_space<smem>>
    %cst_232 = arith.constant 0.000000e+00 : f32
    %190 = vector.broadcast %cst_232 : f32 to vector<8x144xf32>
    %191 = arith.cmpf ogt, %188, %190 : vector<8x144xf32>
    %192 = vector.broadcast %189 : f32 to vector<8x144xf32>
    %193 = arith.mulf %192, %188 : vector<8x144xf32>
    %194 = arith.select %191, %188, %193 : vector<8x144xi1>, vector<8x144xf32>
    %c0_233 = arith.constant 0 : index
    %c0_234 = arith.constant 0 : index
    %c0_235 = arith.constant 0 : index
    %c55_236 = arith.constant 55 : index
    %195 = vector.load %arg2[%c0_233, %c0_234, %c0_235, %c55_236] : memref<1x1x8x270xf32, #tpu.memory_space<vmem>>, vector<1x1x8x144xf32>
    %196 = vector.shape_cast %195 : vector<1x1x8x144xf32> to vector<8x144xf32>
    %197 = arith.addf %194, %196 : vector<8x144xf32>
    %c0_237 = arith.constant 0 : index
    %c0_238 = arith.constant 0 : index
    %c0_239 = arith.constant 0 : index
    %c0_240 = arith.constant 0 : index
    %198 = vector.load %arg14[%c0_237, %c0_238, %c0_239, %c0_240] : memref<1x1x8x144xf32, #tpu.memory_space<vmem>>, vector<1x1x8x144xf32>
    %199 = vector.shape_cast %198 : vector<1x1x8x144xf32> to vector<8x144xf32>
    %200 = vector.shape_cast %197 : vector<8x144xf32> to vector<1x1x8x144xf32>
    tpu.vector_store %arg14[%c0_237, %c0_238, %c0_239, %c0_240], %200 {strides = array<i32>} : memref<1x1x8x144xf32, #tpu.memory_space<vmem>>, vector<1x1x8x144xf32>,
    return
  }
  func.func @transform_0(%arg0: i32, %arg1: i32) -> (i32, i32, i32, i32) {
    %c0_i32 = arith.constant 0 : i32
    %c0_i32_0 = arith.constant 0 : i32
    %c0_i32_1 = arith.constant 0 : i32
    return %arg0, %arg1, %c0_i32, %c0_i32_0 : i32, i32, i32, i32
  }
  func.func @transform_1(%arg0: i32, %arg1: i32) -> (i32, i32) {
    %c0_i32 = arith.constant 0 : i32
    %c0_i32_0 = arith.constant 0 : i32
    %c0_i32_1 = arith.constant 0 : i32
    return %c0_i32, %c0_i32_0 : i32, i32
  }
  func.func @transform_2(%arg0: i32, %arg1: i32) -> (i32, i32) {
    %c0_i32 = arith.constant 0 : i32
    %c0_i32_0 = arith.constant 0 : i32
    %c0_i32_1 = arith.constant 0 : i32
    return %c0_i32, %c0_i32_0 : i32, i32
  }
  func.func @transform_3(%arg0: i32, %arg1: i32) -> (i32, i32) {
    %c0_i32 = arith.constant 0 : i32
    %c0_i32_0 = arith.constant 0 : i32
    %c0_i32_1 = arith.constant 0 : i32
    return %c0_i32, %c0_i32_0 : i32, i32
  }
  func.func @transform_4(%arg0: i32, %arg1: i32) -> (i32, i32) {
    %c0_i32 = arith.constant 0 : i32
    %c0_i32_0 = arith.constant 0 : i32
    %c0_i32_1 = arith.constant 0 : i32
    return %c0_i32, %c0_i32_0 : i32, i32
  }
  func.func @transform_5(%arg0: i32, %arg1: i32) -> (i32, i32) {
    %c0_i32 = arith.constant 0 : i32
    %c0_i32_0 = arith.constant 0 : i32
    %c0_i32_1 = arith.constant 0 : i32
    return %c0_i32, %c0_i32_0 : i32, i32
  }
  func.func @transform_6(%arg0: i32, %arg1: i32) -> (i32, i32) {
    %c0_i32 = arith.constant 0 : i32
    %c0_i32_0 = arith.constant 0 : i32
    %c0_i32_1 = arith.constant 0 : i32
    return %c0_i32, %c0_i32_0 : i32, i32
  }
  func.func @transform_7(%arg0: i32, %arg1: i32) -> (i32, i32) {
    %c0_i32 = arith.constant 0 : i32
    %c0_i32_0 = arith.constant 0 : i32
    %c0_i32_1 = arith.constant 0 : i32
    return %c0_i32, %c0_i32_0 : i32, i32
  }
  func.func @transform_8(%arg0: i32, %arg1: i32) -> (i32, i32) {
    %c0_i32 = arith.constant 0 : i32
    %c0_i32_0 = arith.constant 0 : i32
    %c0_i32_1 = arith.constant 0 : i32
    return %c0_i32, %c0_i32_0 : i32, i32
  }
  func.func @transform_9(%arg0: i32, %arg1: i32) -> (i32, i32) {
    %c0_i32 = arith.constant 0 : i32
    %c0_i32_0 = arith.constant 0 : i32
    %c0_i32_1 = arith.constant 0 : i32
    return %c0_i32, %c0_i32_0 : i32, i32
  }
  func.func @transform_10(%arg0: i32, %arg1: i32) -> (i32, i32) {
    %c0_i32 = arith.constant 0 : i32
    %c0_i32_0 = arith.constant 0 : i32
    %c0_i32_1 = arith.constant 0 : i32
    return %c0_i32, %c0_i32_0 : i32, i32
  }
  func.func @transform_11(%arg0: i32, %arg1: i32) -> (i32, i32) {
    %c0_i32 = arith.constant 0 : i32
    %c0_i32_0 = arith.constant 0 : i32
    %c0_i32_1 = arith.constant 0 : i32
    return %c0_i32, %c0_i32_0 : i32, i32
  }
  func.func @transform_12(%arg0: i32, %arg1: i32) -> (i32, i32, i32, i32) {
    %c0_i32 = arith.constant 0 : i32
    %c0_i32_0 = arith.constant 0 : i32
    %c0_i32_1 = arith.constant 0 : i32
    return %arg0, %arg1, %c0_i32, %c0_i32_0 : i32, i32, i32, i32
  }
}

</mosaic_0001>

<llo_original>
// kernel: _lambda_.1
$region0: #{_lambda_.1}
  #allocation0 [shape = 'u32[]', space=smem, size = 0x4, offset = 0x4, fixed_abs, tag = 'smem constant byte address 0x4 - core index']
  #allocation1 [shape = 'u32[144,128]{1,0:T(1,128)}', space=vmem, size = 0x12000, scoped, tag = 'internal scratch']
  #allocation2 [shape = 'bf16[144,216]{1,0:T(16,128)(2,1)}', space=vmem, size = 0x12000, scoped, tag = 'scratch operand']
  #allocation3 [shape = 'bf16[4,234]{1,0:T(4,128)(2,1)}', space=vmem, size = 0x800, scoped, tag = 'scratch operand']
  #allocation4 [shape = 'bf16[4,198]{1,0:T(4,128)(2,1)}', space=vmem, size = 0x800, scoped, tag = 'scratch operand']
  #allocation5 [shape = 'bf16[8,270]{1,0:T(8,128)(2,1)}', space=vmem, size = 0x1800, scoped, tag = 'scratch operand']
  #allocation6 [shape = 'f32[1,1]{1,0:T(1,128)S(6)}', space=smem, size = 0x200, scoped, tag = 'scoped memory for _lambda_.1']
  #allocation7 [shape = 'f32[1,1]{1,0:T(1,128)S(6)}', space=smem, size = 0x200, scoped, tag = 'scoped memory for _lambda_.1']
  #allocation8 [shape = 'f32[1,1]{1,0:T(1,128)S(6)}', space=smem, size = 0x200, scoped, tag = 'scoped memory for _lambda_.1']
  %s0 = inlined_call_operand.vmem [shape: f32[2,2,8,270], index: 0, kind: input, shape index: {}]
  %s1 = inlined_call_operand.vmem [shape: s32[1,216], index: 1, kind: input, shape index: {}]
  %s2 = inlined_call_operand.vmem [shape: s32[1,216], index: 2, kind: input, shape index: {}]
  %s3 = inlined_call_operand.vmem [shape: bf16[4,72], index: 3, kind: input, shape index: {}]
  %s4 = inlined_call_operand.vmem [shape: f32[4,1], index: 4, kind: input, shape index: {}]
  %s5 = inlined_call_operand.<no memory space> [shape: f32[1,1], index: 5, kind: input, shape index: {}]
  %s6 = inlined_call_operand.vmem [shape: bf16[4,108], index: 6, kind: input, shape index: {}]
  %s7 = inlined_call_operand.vmem [shape: f32[4,1], index: 7, kind: input, shape index: {}]
  %s8 = inlined_call_operand.<no memory space> [shape: f32[1,1], index: 8, kind: input, shape index: {}]
  %s9 = inlined_call_operand.vmem [shape: bf16[8,144], index: 9, kind: input, shape index: {}]
  %s10 = inlined_call_operand.vmem [shape: f32[8,1], index: 10, kind: input, shape index: {}]
  %s11 = inlined_call_operand.<no memory space> [shape: f32[1,1], index: 11, kind: input, shape index: {}]
  %s12 = inlined_call_operand.vmem [shape: f32[2,2,8,144], index: 12, kind: output, shape index: {}]
  %s13 = sld [smem:[#allocation0]]
  $region81: #{_lambda_.1} parent=0
    _
  %s15 = ssub.s32 1, %s13
  %s16 = scalar_select 0, %s15, %s13
  %17 = sst [smem:[#allocation6]] %s5
  %18 = sst [smem:[#allocation7]] %s8
  %19 = sst [smem:[#allocation8]] %s11
  loop: start=0, step=1, limit=6
  $region2: #{_lambda_.1} parent=0 // loop_pre_header
    _
  $region3: #{_lambda_.1} parent=0 // loop_header
    %s21 = sphi 0, %s25
    %p22 = scmp.ge.s32.totalorder %s21, 6
    %s28 = sphi 0, %s40
    %s29 = sphi 0, %s36
    %s30 = sphi 0, %s28
    %s31 = sphi 0, %s29
    %s32 = sphi 0, %s30
    %s33 = sphi 0, %s31
    %s45 = sphi 0, %s47
    %s48 = sphi 0, %s45
    %s49 = sphi 0, %s48
    %s65 = sphi 0, %s49
    %s69 = sphi 0, %s69
    %s71 = sphi 0, %s69
    %s72 = sphi 0, %s71
    %s86 = sphi 0, %s72
    %s90 = sphi 0, %s90
    %s92 = sphi 0, %s90
    %s93 = sphi 0, %s92
    %s107 = sphi 0, %s93
    %s111 = sphi 0, %s111
    %s113 = sphi 0, %s111
    %s114 = sphi 0, %s113
    %s128 = sphi 0, %s114
    %s132 = sphi 0, %s132
    %s134 = sphi 0, %s132
    %s135 = sphi 0, %s134
    %s149 = sphi 0, %s135
    %s153 = sphi 0, %s153
    %s155 = sphi 0, %s153
    %s156 = sphi 0, %s155
    %s170 = sphi 0, %s156
    %s174 = sphi 0, %s174
    %s176 = sphi 0, %s174
    %s177 = sphi 0, %s176
    %s191 = sphi 0, %s177
    %s195 = sphi 0, %s195
    %s197 = sphi 0, %s195
    %s198 = sphi 0, %s197
    %s212 = sphi 0, %s198
    %s216 = sphi 0, %s216
    %s218 = sphi 0, %s216
    %s219 = sphi 0, %s218
    %s233 = sphi 0, %s219
    %s237 = sphi 0, %s237
    %s239 = sphi 0, %s237
    %s240 = sphi 0, %s239
    %s254 = sphi 0, %s240
    %s258 = sphi 0, %s258
    %s260 = sphi 0, %s258
    %s261 = sphi 0, %s260
    %s275 = sphi 0, %s261
    %s279 = sphi 0, %s279
    %s281 = sphi 0, %s279
    %s282 = sphi 0, %s281
    %s296 = sphi 0, %s282
    %s304 = sphi 0, %s306
    %s307 = sphi 0, %s304
    %s308 = sphi 0, %s307
    %s324 = sphi 0, %s308
  $region4: #{_lambda_.1} parent=0 // loop_header_branch
    %24 = sbr.rel (%p22) target = $region8
  $region5: #{_lambda_.1} parent=0 // loop_body
    %s26 = ssub.s32 %s21, 1
    %s27 = ssub.s32 %s21, 2
    %s34 = sadd.s32 1, %s29
    %p35 = scmp.ge.s32.totalorder %s34, 2
    %s36 = scalar_select %p35, 0, %s34
    %s37 = sadd.s32 1, %s28
    %s38 = scalar_select %p35, %s37, %s28
    %p39 = scmp.ge.s32.totalorder %s38, 2
    %s40 = scalar_select %p39, 0, %s38
    %s41 = ssub.s32 %s28, %s40
    %s42 = ssub.s32 %s29, %s36
    %s43 = sor.u32 %s41, %s42
    %p44 = scmp.eq.s32.totalorder %s43, 0
    %s46 = sadd.s32 %s45, 1
    %s47 = scalar_select %p44, %s45, %s46
    %p50 = pneg %p44
    %p51 = scmp.eq.s32.totalorder %s21, 3
    %p52 = por %p50, %p51
    %p53 = scmp.ne.s32.totalorder %s45, %s48
    %p54 = scmp.eq.s32.totalorder %s21, 0
    %p55 = por %p53, %p54
    %p56 = scmp.ne.s32.totalorder %s45, %s48
    %p57 = scmp.eq.s32.totalorder %s26, 3
    %p58 = por %p56, %p57
    %p59 = scmp.ne.s32.totalorder %s48, %s49
    %p60 = scmp.eq.s32.totalorder %s26, 0
    %p61 = por %p59, %p60
    %p62 = scmp.ne.s32.totalorder %s48, %s49
    %p63 = scmp.eq.s32.totalorder %s27, 3
    %p64 = por %p62, %p63
    %p66 = scmp.ne.s32.totalorder %s49, %s65
    %p67 = scmp.eq.s32.totalorder %s27, 0
    %p68 = por %p66, %p67
    %s70 = sadd.s32 %s69, 1
    %p73 = scmp.eq.s32.totalorder %s21, 3
    %p74 = scmp.ne.s32.totalorder %s69, %s71
    %p75 = scmp.eq.s32.totalorder %s21, 0
    %p76 = por %p74, %p75
    %p77 = scmp.ne.s32.totalorder %s69, %s71
    %p78 = scmp.eq.s32.totalorder %s26, 3
    %p79 = por %p77, %p78
    %p80 = scmp.ne.s32.totalorder %s71, %s72
    %p81 = scmp.eq.s32.totalorder %s26, 0
    %p82 = por %p80, %p81
    %p83 = scmp.ne.s32.totalorder %s71, %s72
    %p84 = scmp.eq.s32.totalorder %s27, 3
    %p85 = por %p83, %p84
    %p87 = scmp.ne.s32.totalorder %s72, %s86
    %p88 = scmp.eq.s32.totalorder %s27, 0
    %p89 = por %p87, %p88
    %s91 = sadd.s32 %s90, 1
    %p94 = scmp.eq.s32.totalorder %s21, 3
    %p95 = scmp.ne.s32.totalorder %s90, %s92
    %p96 = scmp.eq.s32.totalorder %s21, 0
    %p97 = por %p95, %p96
    %p98 = scmp.ne.s32.totalorder %s90, %s92
    %p99 = scmp.eq.s32.totalorder %s26, 3
    %p100 = por %p98, %p99
    %p101 = scmp.ne.s32.totalorder %s92, %s93
    %p102 = scmp.eq.s32.totalorder %s26, 0
    %p103 = por %p101, %p102
    %p104 = scmp.ne.s32.totalorder %s92, %s93
    %p105 = scmp.eq.s32.totalorder %s27, 3
    %p106 = por %p104, %p105
    %p108 = scmp.ne.s32.totalorder %s93, %s107
    %p109 = scmp.eq.s32.totalorder %s27, 0
    %p110 = por %p108, %p109
    %s112 = sadd.s32 %s111, 1
    %p115 = scmp.eq.s32.totalorder %s21, 3
    %p116 = scmp.ne.s32.totalorder %s111, %s113
    %p117 = scmp.eq.s32.totalorder %s21, 0
    %p118 = por %p116, %p117
    %p119 = scmp.ne.s32.totalorder %s111, %s113
    %p120 = scmp.eq.s32.totalorder %s26, 3
    %p121 = por %p119, %p120
    %p122 = scmp.ne.s32.totalorder %s113, %s114
    %p123 = scmp.eq.s32.totalorder %s26, 0
    %p124 = por %p122, %p123
    %p125 = scmp.ne.s32.totalorder %s113, %s114
    %p126 = scmp.eq.s32.totalorder %s27, 3
    %p127 = por %p125, %p126
    %p129 = scmp.ne.s32.totalorder %s114, %s128
    %p130 = scmp.eq.s32.totalorder %s27, 0
    %p131 = por %p129, %p130
    %s133 = sadd.s32 %s132, 1
    %p136 = scmp.eq.s32.totalorder %s21, 3
    %p137 = scmp.ne.s32.totalorder %s132, %s134
    %p138 = scmp.eq.s32.totalorder %s21, 0
    %p139 = por %p137, %p138
    %p140 = scmp.ne.s32.totalorder %s132, %s134
    %p141 = scmp.eq.s32.totalorder %s26, 3
    %p142 = por %p140, %p141
    %p143 = scmp.ne.s32.totalorder %s134, %s135
    %p144 = scmp.eq.s32.totalorder %s26, 0
    %p145 = por %p143, %p144
    %p146 = scmp.ne.s32.totalorder %s134, %s135
    %p147 = scmp.eq.s32.totalorder %s27, 3
    %p148 = por %p146, %p147
    %p150 = scmp.ne.s32.totalorder %s135, %s149
    %p151 = scmp.eq.s32.totalorder %s27, 0
    %p152 = por %p150, %p151
    %s154 = sadd.s32 %s153, 1
    %p157 = scmp.eq.s32.totalorder %s21, 3
    %p158 = scmp.ne.s32.totalorder %s153, %s155
    %p159 = scmp.eq.s32.totalorder %s21, 0
    %p160 = por %p158, %p159
    %p161 = scmp.ne.s32.totalorder %s153, %s155
    %p162 = scmp.eq.s32.totalorder %s26, 3
    %p163 = por %p161, %p162
    %p164 = scmp.ne.s32.totalorder %s155, %s156
    %p165 = scmp.eq.s32.totalorder %s26, 0
    %p166 = por %p164, %p165
    %p167 = scmp.ne.s32.totalorder %s155, %s156
    %p168 = scmp.eq.s32.totalorder %s27, 3
    %p169 = por %p167, %p168
    %p171 = scmp.ne.s32.totalorder %s156, %s170
    %p172 = scmp.eq.s32.totalorder %s27, 0
    %p173 = por %p171, %p172
    %s175 = sadd.s32 %s174, 1
    %p178 = scmp.eq.s32.totalorder %s21, 3
    %p179 = scmp.ne.s32.totalorder %s174, %s176
    %p180 = scmp.eq.s32.totalorder %s21, 0
    %p181 = por %p179, %p180
    %p182 = scmp.ne.s32.totalorder %s174, %s176
    %p183 = scmp.eq.s32.totalorder %s26, 3
    %p184 = por %p182, %p183
    %p185 = scmp.ne.s32.totalorder %s176, %s177
    %p186 = scmp.eq.s32.totalorder %s26, 0
    %p187 = por %p185, %p186
    %p188 = scmp.ne.s32.totalorder %s176, %s177
    %p189 = scmp.eq.s32.totalorder %s27, 3
    %p190 = por %p188, %p189
    %p192 = scmp.ne.s32.totalorder %s177, %s191
    %p193 = scmp.eq.s32.totalorder %s27, 0
    %p194 = por %p192, %p193
    %s196 = sadd.s32 %s195, 1
    %p199 = scmp.eq.s32.totalorder %s21, 3
    %p200 = scmp.ne.s32.totalorder %s195, %s197
    %p201 = scmp.eq.s32.totalorder %s21, 0
    %p202 = por %p200, %p201
    %p203 = scmp.ne.s32.totalorder %s195, %s197
    %p204 = scmp.eq.s32.totalorder %s26, 3
    %p205 = por %p203, %p204
    %p206 = scmp.ne.s32.totalorder %s197, %s198
    %p207 = scmp.eq.s32.totalorder %s26, 0
    %p208 = por %p206, %p207
    %p209 = scmp.ne.s32.totalorder %s197, %s198
    %p210 = scmp.eq.s32.totalorder %s27, 3
    %p211 = por %p209, %p210
    %p213 = scmp.ne.s32.totalorder %s198, %s212
    %p214 = scmp.eq.s32.totalorder %s27, 0
    %p215 = por %p213, %p214
    %s217 = sadd.s32 %s216, 1
    %p220 = scmp.eq.s32.totalorder %s21, 3
    %p221 = scmp.ne.s32.totalorder %s216, %s218
    %p222 = scmp.eq.s32.totalorder %s21, 0
    %p223 = por %p221, %p222
    %p224 = scmp.ne.s32.totalorder %s216, %s218
    %p225 = scmp.eq.s32.totalorder %s26, 3
    %p226 = por %p224, %p225
    %p227 = scmp.ne.s32.totalorder %s218, %s219
    %p228 = scmp.eq.s32.totalorder %s26, 0
    %p229 = por %p227, %p228
    %p230 = scmp.ne.s32.totalorder %s218, %s219
    %p231 = scmp.eq.s32.totalorder %s27, 3
    %p232 = por %p230, %p231
    %p234 = scmp.ne.s32.totalorder %s219, %s233
    %p235 = scmp.eq.s32.totalorder %s27, 0
    %p236 = por %p234, %p235
    %s238 = sadd.s32 %s237, 1
    %p241 = scmp.eq.s32.totalorder %s21, 3
    %p242 = scmp.ne.s32.totalorder %s237, %s239
    %p243 = scmp.eq.s32.totalorder %s21, 0
    %p244 = por %p242, %p243
    %p245 = scmp.ne.s32.totalorder %s237, %s239
    %p246 = scmp.eq.s32.totalorder %s26, 3
    %p247 = por %p245, %p246
    %p248 = scmp.ne.s32.totalorder %s239, %s240
    %p249 = scmp.eq.s32.totalorder %s26, 0
    %p250 = por %p248, %p249
    %p251 = scmp.ne.s32.totalorder %s239, %s240
    %p252 = scmp.eq.s32.totalorder %s27, 3
    %p253 = por %p251, %p252
    %p255 = scmp.ne.s32.totalorder %s240, %s254
    %p256 = scmp.eq.s32.totalorder %s27, 0
    %p257 = por %p255, %p256
    %s259 = sadd.s32 %s258, 1
    %p262 = scmp.eq.s32.totalorder %s21, 3
    %p263 = scmp.ne.s32.totalorder %s258, %s260
    %p264 = scmp.eq.s32.totalorder %s21, 0
    %p265 = por %p263, %p264
    %p266 = scmp.ne.s32.totalorder %s258, %s260
    %p267 = scmp.eq.s32.totalorder %s26, 3
    %p268 = por %p266, %p267
    %p269 = scmp.ne.s32.totalorder %s260, %s261
    %p270 = scmp.eq.s32.totalorder %s26, 0
    %p271 = por %p269, %p270
    %p272 = scmp.ne.s32.totalorder %s260, %s261
    %p273 = scmp.eq.s32.totalorder %s27, 3
    %p274 = por %p272, %p273
    %p276 = scmp.ne.s32.totalorder %s261, %s275
    %p277 = scmp.eq.s32.totalorder %s27, 0
    %p278 = por %p276, %p277
    %s280 = sadd.s32 %s279, 1
    %p283 = scmp.eq.s32.totalorder %s21, 3
    %p284 = scmp.ne.s32.totalorder %s279, %s281
    %p285 = scmp.eq.s32.totalorder %s21, 0
    %p286 = por %p284, %p285
    %p287 = scmp.ne.s32.totalorder %s279, %s281
    %p288 = scmp.eq.s32.totalorder %s26, 3
    %p289 = por %p287, %p288
    %p290 = scmp.ne.s32.totalorder %s281, %s282
    %p291 = scmp.eq.s32.totalorder %s26, 0
    %p292 = por %p290, %p291
    %p293 = scmp.ne.s32.totalorder %s281, %s282
    %p294 = scmp.eq.s32.totalorder %s27, 3
    %p295 = por %p293, %p294
    %p297 = scmp.ne.s32.totalorder %s282, %s296
    %p298 = scmp.eq.s32.totalorder %s27, 0
    %p299 = por %p297, %p298
    %s300 = ssub.s32 %s28, %s40
    %s301 = ssub.s32 %s29, %s36
    %s302 = sor.u32 %s300, %s301
    %p303 = scmp.eq.s32.totalorder %s302, 0
    %s305 = sadd.s32 %s304, 1
    %s306 = scalar_select %p303, %s304, %s305
    %p309 = pneg %p303
    %p310 = scmp.eq.s32.totalorder %s21, 3
    %p311 = por %p309, %p310
    %p312 = scmp.ne.s32.totalorder %s304, %s307
    %p313 = scmp.eq.s32.totalorder %s21, 0
    %p314 = por %p312, %p313
    %p315 = scmp.ne.s32.totalorder %s304, %s307
    %p316 = scmp.eq.s32.totalorder %s26, 3
    %p317 = por %p315, %p316
    %p318 = scmp.ne.s32.totalorder %s307, %s308
    %p319 = scmp.eq.s32.totalorder %s26, 0
    %p320 = por %p318, %p319
    %p321 = scmp.ne.s32.totalorder %s307, %s308
    %p322 = scmp.eq.s32.totalorder %s27, 3
    %p323 = por %p321, %p322
    %p325 = scmp.ne.s32.totalorder %s308, %s324
    %p326 = scmp.eq.s32.totalorder %s27, 0
    %p327 = por %p325, %p326
    %p328 = scmp.le.s32.totalorder 1, %s21
    %p329 = scmp.lt.s32.totalorder %s21, 5
    %p330 = pnand %p328, %p329
    %p331 = pneg %p330
    // Predicated region
    $region9: #{_lambda_.1} parent=5 // pred_check
      _
    $region10: #{_lambda_.1} parent=5 // pred_check_branch
      %333 = sbr.rel (%p330) target = $region12
    $region11: #{_lambda_.1} parent=5 // pred_region
      %s334 = ssub.s32 %s21, 1
      // Predicated region
      $region13: #{_lambda_.1} parent=11 // pred_check
        %p335 = pneg %p82
      $region14: #{_lambda_.1} parent=11 // pred_check_branch
        %337 = sbr.rel (%p335) target = $region16
      $region15: #{_lambda_.1} parent=11 // pred_region
        _
      $region16: #{_lambda_.1} parent=11 // pred_fallthru
        _
      // Predicated region
      $region17: #{_lambda_.1} parent=11 // pred_check
        %p338 = pneg %p103
      $region18: #{_lambda_.1} parent=11 // pred_check_branch
        %340 = sbr.rel (%p338) target = $region20
      $region19: #{_lambda_.1} parent=11 // pred_region
        _
      $region20: #{_lambda_.1} parent=11 // pred_fallthru
        _
      // Predicated region
      $region21: #{_lambda_.1} parent=11 // pred_check
        %p341 = pneg %p124
      $region22: #{_lambda_.1} parent=11 // pred_check_branch
        %343 = sbr.rel (%p341) target = $region24
      $region23: #{_lambda_.1} parent=11 // pred_region
        _
      $region24: #{_lambda_.1} parent=11 // pred_fallthru
        _
      // Predicated region
      $region25: #{_lambda_.1} parent=11 // pred_check
        %p344 = pneg %p145
      $region26: #{_lambda_.1} parent=11 // pred_check_branch
        %346 = sbr.rel (%p344) target = $region28
      $region27: #{_lambda_.1} parent=11 // pred_region
        _
      $region28: #{_lambda_.1} parent=11 // pred_fallthru
        _
      // Predicated region
      $region29: #{_lambda_.1} parent=11 // pred_check
        %p347 = pneg %p166
      $region30: #{_lambda_.1} parent=11 // pred_check_branch
        %349 = sbr.rel (%p347) target = $region32
      $region31: #{_lambda_.1} parent=11 // pred_region
        _
      $region32: #{_lambda_.1} parent=11 // pred_fallthru
        _
      // Predicated region
      $region33: #{_lambda_.1} parent=11 // pred_check
        %p350 = pneg %p187
      $region34: #{_lambda_.1} parent=11 // pred_check_branch
        %352 = sbr.rel (%p350) target = $region36
      $region35: #{_lambda_.1} parent=11 // pred_region
        _
      $region36: #{_lambda_.1} parent=11 // pred_fallthru
        _
      // Predicated region
      $region37: #{_lambda_.1} parent=11 // pred_check
        %p353 = pneg %p208
      $region38: #{_lambda_.1} parent=11 // pred_check_branch
        %355 = sbr.rel (%p353) target = $region40
      $region39: #{_lambda_.1} parent=11 // pred_region
        _
      $region40: #{_lambda_.1} parent=11 // pred_fallthru
        _
      // Predicated region
      $region41: #{_lambda_.1} parent=11 // pred_check
        %p356 = pneg %p229
      $region42: #{_lambda_.1} parent=11 // pred_check_branch
        %358 = sbr.rel (%p356) target = $region44
      $region43: #{_lambda_.1} parent=11 // pred_region
        _
      $region44: #{_lambda_.1} parent=11 // pred_fallthru
        _
      // Predicated region
      $region45: #{_lambda_.1} parent=11 // pred_check
        %p359 = pneg %p250
      $region46: #{_lambda_.1} parent=11 // pred_check_branch
        %361 = sbr.rel (%p359) target = $region48
      $region47: #{_lambda_.1} parent=11 // pred_region
        _
      $region48: #{_lambda_.1} parent=11 // pred_fallthru
        _
      // Predicated region
      $region49: #{_lambda_.1} parent=11 // pred_check
        %p362 = pneg %p271
      $region50: #{_lambda_.1} parent=11 // pred_check_branch
        %364 = sbr.rel (%p362) target = $region52
      $region51: #{_lambda_.1} parent=11 // pred_region
        _
      $region52: #{_lambda_.1} parent=11 // pred_fallthru
        _
      // Predicated region
      $region53: #{_lambda_.1} parent=11 // pred_check
        %p365 = pneg %p292
      $region54: #{_lambda_.1} parent=11 // pred_check_branch
        %367 = sbr.rel (%p365) target = $region56
      $region55: #{_lambda_.1} parent=11 // pred_region
        _
      $region56: #{_lambda_.1} parent=11 // pred_fallthru
        _
    $region12: #{_lambda_.1} parent=5 // pred_fallthru
      _
    %p368 = scmp.lt.s32.totalorder %s21, 4
    // Predicated region
    $region57: #{_lambda_.1} parent=5 // pred_check
      %p369 = pneg %p368
    $region58: #{_lambda_.1} parent=5 // pred_check_branch
      %371 = sbr.rel (%p369) target = $region60
    $region59: #{_lambda_.1} parent=5 // pred_region
      // Predicated region
      $region61: #{_lambda_.1} parent=59 // pred_check
        %p372 = pneg %p55
      $region62: #{_lambda_.1} parent=59 // pred_check_branch
        %374 = sbr.rel (%p372) target = $region64
      $region63: #{_lambda_.1} parent=59 // pred_region
        %p375 = scmp.lt.s32.totalorder %s28, 1
        %s376 = scalar_select %p375, %s28, 1
        %p377 = scmp.lt.s32.totalorder %s29, 1
        %s378 = scalar_select %p377, %s29, 1
        %s379 = smul.addr %s378, 3
        %s380 = smul.addr %s376, 6
        %s381 = sadd.s32 %s379, %s380
        %s382 = smul.addr %s381, 8
        %s383 = scalar_lea.vmem %s0, %s382
      $region64: #{_lambda_.1} parent=59 // pred_fallthru
        _
    $region60: #{_lambda_.1} parent=5 // pred_fallthru
      _
    %p384 = scmp.le.s32.totalorder 1, %s21
    %p385 = scmp.lt.s32.totalorder %s21, 5
    %p386 = pnand %p384, %p385
    %p387 = pneg %p386
    // Predicated region
    $region65: #{_lambda_.1} parent=5 // pred_check
      _
    $region66: #{_lambda_.1} parent=5 // pred_check_branch
      %389 = sbr.rel (%p386) target = $region68
    $region67: #{_lambda_.1} parent=5 // pred_region
      %s390 = ssub.s32 %s21, 1
      %p391 = scmp.lt.s32.totalorder %s30, 1
      %s392 = scalar_select %p391, %s30, 1
      %p393 = scmp.lt.s32.totalorder %s31, 1
      %s394 = scalar_select %p393, %s31, 1
      %s395 = smul.addr %s394, 3
      %s396 = smul.addr %s392, 6
      %s397 = sadd.s32 %s395, %s396
      %s398 = smul.addr %s397, 8
      %s399 = scalar_lea.vmem %s0, %s398
      %p400 = pneg %p61
      %p401 = pneg %p58
      %p402 = pneg %p82
      %p403 = pneg %p79
      %p404 = pneg %p103
      %p405 = pneg %p100
      %p406 = pneg %p124
      %p407 = pneg %p121
      %p408 = pneg %p145
      %p409 = pneg %p142
      %p410 = pneg %p166
      %p411 = pneg %p163
      %p412 = pneg %p187
      %p413 = pneg %p184
      %p414 = pneg %p208
      %p415 = pneg %p205
      %p416 = pneg %p229
      %p417 = pneg %p226
      %p418 = pneg %p250
      %p419 = pneg %p247
      %p420 = pneg %p271
      %p421 = pneg %p268
      %p422 = pneg %p292
      %p423 = pneg %p289
      %p424 = pneg %p320
      %p425 = pneg %p317
      %p426 = scmp.lt.s32.totalorder %s30, 1
      %s427 = scalar_select %p426, %s30, 1
      %p428 = scmp.lt.s32.totalorder %s31, 1
      %s429 = scalar_select %p428, %s31, 1
      %s430 = smul.addr %s429, 2
      %s431 = smul.addr %s427, 4
      %s432 = sadd.s32 %s430, %s431
      %s433 = smul.addr %s432, 8
      %s434 = scalar_lea.vmem %s12, %s433
      %p435 = scmp.lt.s32.totalorder %s30, 1
      %s436 = scalar_select %p435, %s30, 1
      %p437 = scmp.lt.s32.totalorder %s31, 1
      %s438 = scalar_select %p437, %s31, 1
      %s439 = smul.addr %s438, 3
      %s440 = smul.addr %s436, 6
      %s441 = sadd.s32 %s439, %s440
      %s442 = smul.addr %s441, 8
      %s443 = scalar_lea.vmem %s0, %s442
      %p444 = scmp.lt.s32.totalorder %s30, 1
      %s445 = scalar_select %p444, %s30, 1
      %p446 = scmp.lt.s32.totalorder %s31, 1
      %s447 = scalar_select %p446, %s31, 1
      %s448 = smul.addr %s447, 2
      %s449 = smul.addr %s445, 4
      %s450 = sadd.s32 %s448, %s449
      %s451 = smul.addr %s450, 8
      %s452 = scalar_lea.vmem %s12, %s451
      %s454 = smul.u32 %s31, 8
      %v455 = vld [vmem:[%s1] sm:$0x3]
      %v456 = vld [vmem:[%s2] sm:$0x3]
      %vm457 = vcmp.lt.s32.totalorder %v456, 16
      %v458 = vld [vmem:[%s443] sm:$0xff]
      %v459 = vld [vmem:[%s443 + $0x8] sm:$0xff]
      %v460 = vld [vmem:[%s443 + $0x10] sm:$0xff]
      %v461 = vpack.c.bf16 %v458, %v458
      %v462 = vpack.c.bf16 %v459, %v459
      %v463 = vpack.c.bf16 %v460, %v460
      %v467 = vunpack.c.l.b16 %v461
      %v468 = vunpack.c.l.b16 %v462
      %v469 = vunpack.c.l.b16 %v463
      %v470 = vpack.c.b16 %v468, %v467
      %v471 = vpack.c.b16 %v469, %v469
      %474 = vst [vmem:[#allocation5] sm:$0xff] %v470
      %vm475 = vcmask 109568
      %476 = vst.msk [vmem:[#allocation5 + $0x8] sm:$0xf] %vm475, %v471
      %v477 = vld [vmem:[#allocation5] sm:$0xff]
      %v479 = vunpack.c.l.b16 %v477
      %v480 = vunpack.c.h.b16 %v477
      %v481 = vpack.c.b16 %v479, %v479
      %v482 = vpack.c.b16 %v480, %v480
      %485 = vst [vmem:[#allocation2] sm:$0xf] %v481
      %vm486 = vcmask 715776
      %487 = vst.msk [vmem:[#allocation2 + $0x8] sm:$0xf] %vm486, %v482
      %v488 = vld [vmem:[#allocation5] sm:$0xff]
      %v490 = vunpack.c.l.b16 %v488
      %v491 = vunpack.c.h.b16 %v488
      %v492 = vpack.c.b16 %v490, %v490
      %v493 = vpack.c.b16 %v491, %v491
      %494 = vrot.lane.b32.xlu0 %v492, 127
      %v495 = vpop.permute.xlu0 %494
      %496 = vrot.lane.b32.xlu0 %v493, 127
      %v497 = vpop.permute.xlu0 %496
      %vm498 = vcmask 1039360
      %v499 = vsel %vm498, %v495, %v497
      %502 = vst [vmem:[#allocation2] sm:$0xf0] %v499
      %vm503 = vcmask 719876
      %504 = vst.msk [vmem:[#allocation2 + $0x8] sm:$0xf0] %vm503, %v497
      %v505 = vld [vmem:[#allocation5] sm:$0xff]
      %v507 = vunpack.c.l.b16 %v505
      %v508 = vunpack.c.h.b16 %v505
      %v509 = vpack.c.b16 %v507, %v507
      %v510 = vpack.c.b16 %v508, %v508
      %511 = vrot.lane.b32.xlu0 %v509, 126
      %v512 = vpop.permute.xlu0 %511
      %513 = vrot.lane.b32.xlu0 %v510, 126
      %v514 = vpop.permute.xlu0 %513
      %vm515 = vcmask 1031168
      %v516 = vsel %vm515, %v512, %v514
      %519 = vst [vmem:[#allocation2 + $0x10] sm:$0xf] %v516
      %520 = vst.msk [vmem:[#allocation2 + $0x18] sm:$0xf] %vm486, %v514
      %v521 = vld [vmem:[#allocation5] sm:$0xff]
      %v523 = vunpack.c.l.b16 %v521
      %v524 = vunpack.c.h.b16 %v521
      %v525 = vpack.c.b16 %v523, %v523
      %v526 = vpack.c.b16 %v524, %v524
      %527 = vrot.lane.b32.xlu0 %v525, 110
      %v528 = vpop.permute.xlu0 %527
      %529 = vrot.lane.b32.xlu0 %v526, 110
      %v530 = vpop.permute.xlu0 %529
      %vm531 = vcmask 900096
      %v532 = vsel %vm531, %v528, %v530
      %535 = vst [vmem:[#allocation2 + $0x10] sm:$0xf0] %v532
      %536 = vst.msk [vmem:[#allocation2 + $0x18] sm:$0xf0] %vm503, %v530
      %v537 = vld [vmem:[#allocation5] sm:$0xff]
      %v539 = vunpack.c.l.b16 %v537
      %v540 = vunpack.c.h.b16 %v537
      %v541 = vpack.c.b16 %v539, %v539
      %v542 = vpack.c.b16 %v540, %v540
      %543 = vrot.lane.b32.xlu0 %v541, 109
      %v544 = vpop.permute.xlu0 %543
      %545 = vrot.lane.b32.xlu0 %v542, 109
      %v546 = vpop.permute.xlu0 %545
      %vm547 = vcmask 891904
      %v548 = vsel %vm547, %v544, %v546
      %551 = vst [vmem:[#allocation2 + $0x20] sm:$0xf] %v548
      %552 = vst.msk [vmem:[#allocation2 + $0x28] sm:$0xf] %vm486, %v546
      %v553 = vld [vmem:[#allocation5] sm:$0xff]
      %v555 = vunpack.c.l.b16 %v553
      %v556 = vunpack.c.h.b16 %v553
      %v557 = vpack.c.b16 %v555, %v555
      %v558 = vpack.c.b16 %v556, %v556
      %559 = vrot.lane.b32.xlu0 %v557, 108
      %v560 = vpop.permute.xlu0 %559
      %561 = vrot.lane.b32.xlu0 %v558, 108
      %v562 = vpop.permute.xlu0 %561
      %vm563 = vcmask 883712
      %v564 = vsel %vm563, %v560, %v562
      %567 = vst [vmem:[#allocation2 + $0x20] sm:$0xf0] %v564
      %568 = vst.msk [vmem:[#allocation2 + $0x28] sm:$0xf0] %vm503, %v562
      %v569 = vld [vmem:[#allocation5] sm:$0xff]
      %v571 = vunpack.c.l.b16 %v569
      %v572 = vunpack.c.h.b16 %v569
      %v573 = vpack.c.b16 %v571, %v571
      %v574 = vpack.c.b16 %v572, %v572
      %575 = vrot.lane.b32.xlu0 %v573, 92
      %v576 = vpop.permute.xlu0 %575
      %577 = vrot.lane.b32.xlu0 %v574, 92
      %v578 = vpop.permute.xlu0 %577
      %vm579 = vcmask 752640
      %v580 = vsel %vm579, %v576, %v578
      %583 = vst [vmem:[#allocation2 + $0x30] sm:$0xf] %v580
      %584 = vst.msk [vmem:[#allocation2 + $0x38] sm:$0xf] %vm486, %v578
      %v585 = vld [vmem:[#allocation5] sm:$0xff]
      %v587 = vunpack.c.l.b16 %v585
      %v588 = vunpack.c.h.b16 %v585
      %v589 = vpack.c.b16 %v587, %v587
      %v590 = vpack.c.b16 %v588, %v588
      %591 = vrot.lane.b32.xlu0 %v589, 91
      %v592 = vpop.permute.xlu0 %591
      %593 = vrot.lane.b32.xlu0 %v590, 91
      %v594 = vpop.permute.xlu0 %593
      %vm595 = vcmask 744448
      %v596 = vsel %vm595, %v592, %v594
      %599 = vst [vmem:[#allocation2 + $0x30] sm:$0xf0] %v596
      %600 = vst.msk [vmem:[#allocation2 + $0x38] sm:$0xf0] %vm503, %v594
      %v601 = vld [vmem:[#allocation5] sm:$0xff]
      %v603 = vunpack.c.l.b16 %v601
      %v604 = vunpack.c.h.b16 %v601
      %v605 = vpack.c.b16 %v603, %v603
      %v606 = vpack.c.b16 %v604, %v604
      %607 = vrot.lane.b32.xlu0 %v605, 90
      %v608 = vpop.permute.xlu0 %607
      %609 = vrot.lane.b32.xlu0 %v606, 90
      %v610 = vpop.permute.xlu0 %609
      %vm611 = vcmask 736256
      %v612 = vsel %vm611, %v608, %v610
      %615 = vst [vmem:[#allocation2 + $0x40] sm:$0xf] %v612
      %616 = vst.msk [vmem:[#allocation2 + $0x48] sm:$0xf] %vm486, %v610
      %v617 = vld [vmem:[%s3] sm:$0x3]
      %v618 = vld [vmem:[#allocation2] sm:$0xff]
      %v619 = vld [vmem:[#allocation2 + $0x8] sm:$0xff]
      %v620 = vld [vmem:[#allocation2 + $0x10] sm:$0xff]
      %v621 = vld [vmem:[#allocation2 + $0x18] sm:$0xff]
      %v622 = vld [vmem:[#allocation2 + $0x20] sm:$0xff]
      %v623 = vld [vmem:[#allocation2 + $0x28] sm:$0xff]
      %v624 = vld [vmem:[#allocation2 + $0x30] sm:$0xff]
      %v625 = vld [vmem:[#allocation2 + $0x38] sm:$0xff]
      %v626 = vld [vmem:[#allocation2 + $0x40] sm:$0xf]
      %v627 = vld [vmem:[#allocation2 + $0x48] sm:$0xf]
      %v628 = vld [vmem:[%s4] sm:$0xf]
      %630 = vset.pattern.permute.xlu0 0
      %631 = vperm.xlu0 %630, %v628
      %v632 = vpop.permute.xlu0 %631
      %vm634 = vcmask 588800
      %v636 = vsel %vm634, %v617, 0
      %vm638 = vcmask 1043456
      %v640 = vsel %vm638, %v626, 0
      %v643 = vsel %vm638, %v627, 0
      %645 = vmatprep.subr.bf16.mxu0 %v619
      %646 = vmatpush1.bf16.msra.mxu0 %v618
      %647 = vmatprep.subr.bf16.mxu0 %v621
      %648 = vmatpush1.bf16.msra.mxu0 %v620
      %649 = vmatprep.subr.bf16.mxu0 %v623
      %650 = vmatpush1.bf16.msra.mxu0 %v622
      %651 = vmatprep.subr.bf16.mxu0 %v625
      %652 = vmatpush1.bf16.msra.mxu0 %v624
      %653 = vmatprep.subr.bf16.mxu0 %v643
      %654 = vmatpush1.bf16.msra.mxu0 %v640
      %655 = vmatprep.subr.bf16.mxu0 0
      %656 = vmatpush1.bf16.msra.mxu0 0
      %657 = vmatprep.subr.bf16.mxu0 0
      %658 = vmatpush1.bf16.msra.mxu0 0
      %659 = vmatprep.subr.bf16.mxu0 0
      %660 = vmatpush1.bf16.msra.mxu0 0
      %661 = vmatprep.subr.bf16.mxu0 0
      %662 = vmatpush1.bf16.msra.mxu0 0
      %663 = vmatprep.subr.bf16.mxu0 0
      %664 = vmatpush1.bf16.msra.mxu0 0
      %665 = vmatprep.subr.bf16.mxu0 0
      %666 = vmatpush1.bf16.msra.mxu0 0
      %667 = vmatprep.subr.bf16.mxu0 0
      %668 = vmatpush1.bf16.msra.mxu0 0
      %669 = vmatprep.subr.bf16.mxu0 0
      %670 = vmatpush1.bf16.msra.mxu0 0
      %671 = vmatprep.subr.bf16.mxu0 0
      %672 = vmatpush1.bf16.msra.mxu0 0
      %673 = vmatprep.subr.bf16.mxu0 0
      %674 = vmatpush1.bf16.msra.mxu0 0
      %675 = vmatprep.subr.bf16.mxu0 0
      %676 = vmatpush1.bf16.msra.mxu0 0
      %677 = vmatprep.mubr.bf16.mxu0 0
      %678 = vmatmul.mubr.bf16.gmra.mrb[0].mxu0 %v636
      %v679 = vpop.f32.mrb[0].mxu0
      %v680 = vadd.f32 %v632, %v679
      %v681 = vpop.f32.mrb[0].mxu0
      %v682 = vadd.f32 %v632, %v681
      %v683 = vpop.f32.mrb[0].mxu0
      %v684 = vpop.f32.mrb[0].mxu0
      %685 = vdwg.mxu0
      %s686 = sld [smem:[#allocation6]]
      %vm687 = vcmp.gt.f32.partialorder %v680, 0.0
      %vm688 = vcmp.gt.f32.partialorder %v682, 0.0
      %v689 = vstv %s686
      %v690 = vmul.f32 %v689, %v680
      %v691 = vmul.f32 %v689, %v682
      %v692 = vsel %vm687, %v680, %v690
      %v693 = vsel %vm688, %v682, %v691
      %s694 = ssub.s32 2, %s454
      %p695 = scmp.gt.s32.totalorder %s694, 0
      %s696 = scalar_select %p695, %s694, 0
      %s697 = ssub.s32 18, %s454
      %p698 = scmp.lt.s32.totalorder %s697, 12
      %s699 = scalar_select %p698, %s697, 12
      %v700 = vstv %s696
      %vm701 = vcmp.ge.s32.totalorder %v455, %v700
      %vm702 = vmand %vm457, %vm701
      %v703 = vstv %s699
      %vm704 = vcmp.lt.s32.totalorder %v455, %v703
      %vm705 = vmand %vm702, %vm704
      %v706 = vsel %vm705, 1, 0
      %v707 = vlaneseq
      %v708 = vshrl.u32 %v707, 7
      %v709 = vsub.s32 0, %v708
      %v710 = vrot.slane %v706, %v709
      %v711 = vlaneseq
      %v712 = vshrl.u32 %v711, 7
      %v713 = vsub.s32 1, %v712
      %v714 = vrot.slane %v706, %v713
      %vm715 = vcmp.eq.s32.totalorder %v710, 1
      %vm716 = vcmp.eq.s32.totalorder %v714, 1
      %v717 = vsel %vm715, %v692, 0.0
      %v718 = vsel %vm716, %v693, 0.0
      %v719 = vpack.c.bf16 %v717, %v717
      %v720 = vpack.c.bf16 %v718, %v718
      %vm721 = vcmask 1024
      %722 = vst.msk [vmem:[#allocation3] sm:$0x3] %vm721, 0
      %v725 = vcombine.low %v719, %v720
      %v727 = vunpack.c.l.s4 1983009808
      %v728 = vunpack.c.0.s8 %v727
      %v729 = vlaneseq
      %v730 = vshrl.u32 %v729, 7
      %v731 = vsub.s32 %v728, %v730
      %v732 = vrot.slane %v725, %v731
      %733 = vrot.lane.b32.xlu0 %v732, 1
      %v734 = vpop.permute.xlu0 %733
      %v735 = vrot.slane %v734, 6
      %vm736 = vcmask 7168
      %v737 = vsel %vm736, %v735, %v734
      %vm739 = vcmask 1041416
      %vm740 = vcmask 723970
      %vm741 = vmor %vm740, %vm739
      %742 = vst.msk [vmem:[#allocation3] sm:$0xf] %vm741, %v737
      %vm743 = vcmask 861896
      %744 = vst.msk [vmem:[#allocation3 + $0x2] sm:$0x3] %vm743, 0
      %v745 = vld [vmem:[#allocation5] sm:$0xff]
      %v747 = vunpack.c.l.b16 %v745
      %v748 = vunpack.c.h.b16 %v745
      %v749 = vpack.c.b16 %v747, %v747
      %v750 = vpack.c.b16 %v748, %v748
      %751 = vrot.lane.b32.xlu0 %v749, 110
      %v752 = vpop.permute.xlu0 %751
      %753 = vrot.lane.b32.xlu0 %v750, 110
      %v754 = vpop.permute.xlu0 %753
      %v755 = vsel %vm531, %v752, %v754
      %758 = vst [vmem:[#allocation2] sm:$0xf] %v755
      %vm759 = vcmask 420864
      %760 = vst.msk [vmem:[#allocation2 + $0x8] sm:$0xf] %vm759, %v754
      %v761 = vld [vmem:[#allocation5] sm:$0xff]
      %v763 = vunpack.c.l.b16 %v761
      %v764 = vunpack.c.h.b16 %v761
      %v765 = vpack.c.b16 %v763, %v763
      %v766 = vpack.c.b16 %v764, %v764
      %767 = vrot.lane.b32.xlu0 %v765, 109
      %v768 = vpop.permute.xlu0 %767
      %769 = vrot.lane.b32.xlu0 %v766, 109
      %v770 = vpop.permute.xlu0 %769
      %v771 = vsel %vm547, %v768, %v770
      %774 = vst [vmem:[#allocation2] sm:$0xf0] %v771
      %vm775 = vcmask 424964
      %776 = vst.msk [vmem:[#allocation2 + $0x8] sm:$0xf0] %vm775, %v770
      %v777 = vld [vmem:[#allocation5] sm:$0xff]
      %v779 = vunpack.c.l.b16 %v777
      %v780 = vunpack.c.h.b16 %v777
      %v781 = vpack.c.b16 %v779, %v779
      %v782 = vpack.c.b16 %v780, %v780
      %783 = vrot.lane.b32.xlu0 %v781, 108
      %v784 = vpop.permute.xlu0 %783
      %785 = vrot.lane.b32.xlu0 %v782, 108
      %v786 = vpop.permute.xlu0 %785
      %v787 = vsel %vm563, %v784, %v786
      %790 = vst [vmem:[#allocation2 + $0x10] sm:$0xf] %v787
      %791 = vst.msk [vmem:[#allocation2 + $0x18] sm:$0xf] %vm759, %v786
      %v792 = vld [vmem:[#allocation5] sm:$0xff]
      %v794 = vunpack.c.l.b16 %v792
      %v795 = vunpack.c.h.b16 %v792
      %v796 = vpack.c.b16 %v794, %v794
      %v797 = vpack.c.b16 %v795, %v795
      %798 = vrot.lane.b32.xlu0 %v796, 92
      %v799 = vpop.permute.xlu0 %798
      %800 = vrot.lane.b32.xlu0 %v797, 92
      %v801 = vpop.permute.xlu0 %800
      %v802 = vsel %vm579, %v799, %v801
      %805 = vst [vmem:[#allocation2 + $0x10] sm:$0xf0] %v802
      %806 = vst.msk [vmem:[#allocation2 + $0x18] sm:$0xf0] %vm775, %v801
      %v807 = vld [vmem:[#allocation5] sm:$0xff]
      %v809 = vunpack.c.l.b16 %v807
      %v810 = vunpack.c.h.b16 %v807
      %v811 = vpack.c.b16 %v809, %v809
      %v812 = vpack.c.b16 %v810, %v810
      %813 = vrot.lane.b32.xlu0 %v811, 91
      %v814 = vpop.permute.xlu0 %813
      %815 = vrot.lane.b32.xlu0 %v812, 91
      %v816 = vpop.permute.xlu0 %815
      %v817 = vsel %vm595, %v814, %v816
      %820 = vst [vmem:[#allocation2 + $0x20] sm:$0xf] %v817
      %821 = vst.msk [vmem:[#allocation2 + $0x28] sm:$0xf] %vm759, %v816
      %v822 = vld [vmem:[#allocation5] sm:$0xff]
      %v824 = vunpack.c.l.b16 %v822
      %v825 = vunpack.c.h.b16 %v822
      %v826 = vpack.c.b16 %v824, %v824
      %v827 = vpack.c.b16 %v825, %v825
      %828 = vrot.lane.b32.xlu0 %v826, 90
      %v829 = vpop.permute.xlu0 %828
      %830 = vrot.lane.b32.xlu0 %v827, 90
      %v831 = vpop.permute.xlu0 %830
      %v832 = vsel %vm611, %v829, %v831
      %835 = vst [vmem:[#allocation2 + $0x20] sm:$0xf0] %v832
      %836 = vst.msk [vmem:[#allocation2 + $0x28] sm:$0xf0] %vm775, %v831
      %v837 = vld [vmem:[#allocation5] sm:$0xff]
      %v839 = vunpack.c.l.b16 %v837
      %v840 = vunpack.c.h.b16 %v837
      %v841 = vpack.c.b16 %v839, %v839
      %v842 = vpack.c.b16 %v840, %v840
      %843 = vrot.lane.b32.xlu0 %v841, 74
      %v844 = vpop.permute.xlu0 %843
      %845 = vrot.lane.b32.xlu0 %v842, 74
      %v846 = vpop.permute.xlu0 %845
      %vm847 = vcmask 605184
      %v848 = vsel %vm847, %v844, %v846
      %851 = vst [vmem:[#allocation2 + $0x30] sm:$0xf] %v848
      %852 = vst.msk [vmem:[#allocation2 + $0x38] sm:$0xf] %vm759, %v846
      %v853 = vld [vmem:[#allocation5] sm:$0xff]
      %v855 = vunpack.c.l.b16 %v853
      %v856 = vunpack.c.h.b16 %v853
      %v857 = vpack.c.b16 %v855, %v855
      %v858 = vpack.c.b16 %v856, %v856
      %859 = vrot.lane.b32.xlu0 %v857, 73
      %v860 = vpop.permute.xlu0 %859
      %861 = vrot.lane.b32.xlu0 %v858, 73
      %v862 = vpop.permute.xlu0 %861
      %vm863 = vcmask 596992
      %v864 = vsel %vm863, %v860, %v862
      %867 = vst [vmem:[#allocation2 + $0x30] sm:$0xf0] %v864
      %868 = vst.msk [vmem:[#allocation2 + $0x38] sm:$0xf0] %vm775, %v862
      %v869 = vld [vmem:[#allocation5] sm:$0xff]
      %v871 = vunpack.c.l.b16 %v869
      %v872 = vunpack.c.h.b16 %v869
      %v873 = vpack.c.b16 %v871, %v871
      %v874 = vpack.c.b16 %v872, %v872
      %875 = vrot.lane.b32.xlu0 %v873, 72
      %v876 = vpop.permute.xlu0 %875
      %877 = vrot.lane.b32.xlu0 %v874, 72
      %v878 = vpop.permute.xlu0 %877
      %vm879 = vcmask 588800
      %v880 = vsel %vm879, %v876, %v878
      %883 = vst [vmem:[#allocation2 + $0x40] sm:$0xf] %v880
      %884 = vst.msk [vmem:[#allocation2 + $0x48] sm:$0xf] %vm759, %v878
      %v885 = vld [vmem:[#allocation3] sm:$0xf]
      %v888 = vunpack.c.l.s4 1983009808
      %v889 = vunpack.c.0.s8 %v888
      %v890 = vlaneseq
      %v891 = vshrl.u32 %v890, 7
      %v892 = vsub.s32 %v889, %v891
      %v893 = vrot.slane %v885, %v892
      %v894 = vcombine.low %v893, %v893
      %897 = vst [vmem:[#allocation2 + $0x40] sm:$0x30] %v894
      %vm898 = vcmask 422916
      %899 = vst.msk [vmem:[#allocation2 + $0x48] sm:$0x30] %vm898, %v893
      %v900 = vld [vmem:[#allocation3] sm:$0xf]
      %v902 = vcombine.low %v900, %v900
      %v904 = vunpack.c.l.s4 1983009808
      %v905 = vunpack.c.0.s8 %v904
      %v906 = vlaneseq
      %v907 = vshrl.u32 %v906, 7
      %v908 = vsub.s32 %v905, %v907
      %v909 = vrot.slane %v902, %v908
      %v910 = vcombine.low %v909, %v909
      %911 = vrot.lane.b32.xlu0 %v910, 127
      %v912 = vpop.permute.xlu0 %911
      %913 = vrot.lane.b32.xlu0 %v909, 127
      %v914 = vpop.permute.xlu0 %913
      %v915 = vsel %vm498, %v912, %v914
      %918 = vst [vmem:[#allocation2 + $0x40] sm:$0xc0] %v915
      %vm919 = vcmask 424966
      %920 = vst.msk [vmem:[#allocation2 + $0x48] sm:$0xc0] %vm919, %v914
      %v921 = vld [vmem:[#allocation3] sm:$0xf]
      %v924 = vunpack.c.l.s4 1983009808
      %v925 = vunpack.c.0.s8 %v924
      %v926 = vlaneseq
      %v927 = vshrl.u32 %v926, 7
      %v928 = vsub.s32 %v925, %v927
      %v929 = vrot.slane %v921, %v928
      %v930 = vcombine.high %v929, %v929
      %931 = vrot.lane.b32.xlu0 %v929, 126
      %v932 = vpop.permute.xlu0 %931
      %933 = vrot.lane.b32.xlu0 %v930, 126
      %v934 = vpop.permute.xlu0 %933
      %v935 = vsel %vm515, %v932, %v934
      %938 = vst [vmem:[#allocation2 + $0x50] sm:$0x3] %v935
      %vm939 = vcmask 418816
      %940 = vst.msk [vmem:[#allocation2 + $0x58] sm:$0x3] %vm939, %v934
      %v941 = vld [vmem:[#allocation3] sm:$0xf]
      %v943 = vcombine.low %v941, %v941
      %v945 = vunpack.c.l.s4 1983009808
      %v946 = vunpack.c.0.s8 %v945
      %v947 = vlaneseq
      %v948 = vshrl.u32 %v947, 7
      %v949 = vsub.s32 %v946, %v948
      %v950 = vrot.slane %v943, %v949
      %v951 = vcombine.high %v950, %v950
      %952 = vrot.lane.b32.xlu0 %v950, 110
      %v953 = vpop.permute.xlu0 %952
      %954 = vrot.lane.b32.xlu0 %v951, 110
      %v955 = vpop.permute.xlu0 %954
      %v956 = vsel %vm531, %v953, %v955
      %959 = vst [vmem:[#allocation2 + $0x50] sm:$0xc] %v956
      %vm960 = vcmask 420866
      %961 = vst.msk [vmem:[#allocation2 + $0x58] sm:$0xc] %vm960, %v955
      %v962 = vld [vmem:[#allocation3] sm:$0xf]
      %v965 = vunpack.c.l.s4 1983009808
      %v966 = vunpack.c.0.s8 %v965
      %v967 = vlaneseq
      %v968 = vshrl.u32 %v967, 7
      %v969 = vsub.s32 %v966, %v968
      %v970 = vrot.slane %v962, %v969
      %v971 = vcombine.low %v970, %v970
      %972 = vrot.lane.b32.xlu0 %v971, 109
      %v973 = vpop.permute.xlu0 %972
      %974 = vrot.lane.b32.xlu0 %v970, 109
      %v975 = vpop.permute.xlu0 %974
      %v976 = vsel %vm547, %v973, %v975
      %979 = vst [vmem:[#allocation2 + $0x50] sm:$0x30] %v976
      %980 = vst.msk [vmem:[#allocation2 + $0x58] sm:$0x30] %vm898, %v975
      %v981 = vld [vmem:[#allocation3] sm:$0xf]
      %v983 = vcombine.low %v981, %v981
      %v985 = vunpack.c.l.s4 1983009808
      %v986 = vunpack.c.0.s8 %v985
      %v987 = vlaneseq
      %v988 = vshrl.u32 %v987, 7
      %v989 = vsub.s32 %v986, %v988
      %v990 = vrot.slane %v983, %v989
      %v991 = vcombine.low %v990, %v990
      %992 = vrot.lane.b32.xlu0 %v991, 108
      %v993 = vpop.permute.xlu0 %992
      %994 = vrot.lane.b32.xlu0 %v990, 108
      %v995 = vpop.permute.xlu0 %994
      %v996 = vsel %vm563, %v993, %v995
      %999 = vst [vmem:[#allocation2 + $0x50] sm:$0xc0] %v996
      %1000 = vst.msk [vmem:[#allocation2 + $0x58] sm:$0xc0] %vm919, %v995
      %v1001 = vld [vmem:[#allocation3] sm:$0xf]
      %v1004 = vunpack.c.l.s4 1983009808
      %v1005 = vunpack.c.0.s8 %v1004
      %v1006 = vlaneseq
      %v1007 = vshrl.u32 %v1006, 7
      %v1008 = vsub.s32 %v1005, %v1007
      %v1009 = vrot.slane %v1001, %v1008
      %v1010 = vcombine.high %v1009, %v1009
      %1011 = vrot.lane.b32.xlu0 %v1009, 92
      %v1012 = vpop.permute.xlu0 %1011
      %1013 = vrot.lane.b32.xlu0 %v1010, 92
      %v1014 = vpop.permute.xlu0 %1013
      %v1015 = vsel %vm579, %v1012, %v1014
      %1018 = vst [vmem:[#allocation2 + $0x60] sm:$0x3] %v1015
      %1019 = vst.msk [vmem:[#allocation2 + $0x68] sm:$0x3] %vm939, %v1014
      %v1020 = vld [vmem:[#allocation3] sm:$0xf]
      %v1022 = vcombine.low %v1020, %v1020
      %v1024 = vunpack.c.l.s4 1983009808
      %v1025 = vunpack.c.0.s8 %v1024
      %v1026 = vlaneseq
      %v1027 = vshrl.u32 %v1026, 7
      %v1028 = vsub.s32 %v1025, %v1027
      %v1029 = vrot.slane %v1022, %v1028
      %v1030 = vcombine.high %v1029, %v1029
      %1031 = vrot.lane.b32.xlu0 %v1029, 91
      %v1032 = vpop.permute.xlu0 %1031
      %1033 = vrot.lane.b32.xlu0 %v1030, 91
      %v1034 = vpop.permute.xlu0 %1033
      %v1035 = vsel %vm595, %v1032, %v1034
      %1038 = vst [vmem:[#allocation2 + $0x60] sm:$0xc] %v1035
      %1039 = vst.msk [vmem:[#allocation2 + $0x68] sm:$0xc] %vm960, %v1034
      %v1040 = vld [vmem:[#allocation3] sm:$0xf]
      %v1043 = vunpack.c.l.s4 1983009808
      %v1044 = vunpack.c.0.s8 %v1043
      %v1045 = vlaneseq
      %v1046 = vshrl.u32 %v1045, 7
      %v1047 = vsub.s32 %v1044, %v1046
      %v1048 = vrot.slane %v1040, %v1047
      %v1049 = vcombine.low %v1048, %v1048
      %1050 = vrot.lane.b32.xlu0 %v1049, 90
      %v1051 = vpop.permute.xlu0 %1050
      %1052 = vrot.lane.b32.xlu0 %v1048, 90
      %v1053 = vpop.permute.xlu0 %1052
      %v1054 = vsel %vm611, %v1051, %v1053
      %1057 = vst [vmem:[#allocation2 + $0x60] sm:$0x30] %v1054
      %1058 = vst.msk [vmem:[#allocation2 + $0x68] sm:$0x30] %vm898, %v1053
      %v1059 = vld [vmem:[%s6] sm:$0x3]
      %v1060 = vld [vmem:[#allocation2] sm:$0xff]
      %v1061 = vld [vmem:[#allocation2 + $0x8] sm:$0xff]
      %v1062 = vld [vmem:[#allocation2 + $0x10] sm:$0xff]
      %v1063 = vld [vmem:[#allocation2 + $0x18] sm:$0xff]
      %v1064 = vld [vmem:[#allocation2 + $0x20] sm:$0xff]
      %v1065 = vld [vmem:[#allocation2 + $0x28] sm:$0xff]
      %v1066 = vld [vmem:[#allocation2 + $0x30] sm:$0xff]
      %v1067 = vld [vmem:[#allocation2 + $0x38] sm:$0xff]
      %v1068 = vld [vmem:[#allocation2 + $0x40] sm:$0xff]
      %v1069 = vld [vmem:[#allocation2 + $0x48] sm:$0xff]
      %v1070 = vld [vmem:[#allocation2 + $0x50] sm:$0xff]
      %v1071 = vld [vmem:[#allocation2 + $0x58] sm:$0xff]
      %v1072 = vld [vmem:[#allocation2 + $0x60] sm:$0x3f]
      %v1073 = vld [vmem:[#allocation2 + $0x68] sm:$0x3f]
      %v1074 = vld [vmem:[%s7] sm:$0xf]
      %1076 = vset.pattern.permute.xlu0 0
      %1077 = vperm.xlu0 %1076, %v1074
      %v1078 = vpop.permute.xlu0 %1077
      %vm1080 = vcmask 883712
      %v1082 = vsel %vm1080, %v1059, 0
      %vm1084 = vcmask 1045504
      %v1086 = vsel %vm1084, %v1072, 0
      %v1089 = vsel %vm1084, %v1073, 0
      %1091 = vmatprep.subr.bf16.mxu0 %v1061
      %1092 = vmatpush1.bf16.msra.mxu0 %v1060
      %1093 = vmatprep.subr.bf16.mxu0 %v1063
      %1094 = vmatpush1.bf16.msra.mxu0 %v1062
      %1095 = vmatprep.subr.bf16.mxu0 %v1065
      %1096 = vmatpush1.bf16.msra.mxu0 %v1064
      %1097 = vmatprep.subr.bf16.mxu0 %v1067
      %1098 = vmatpush1.bf16.msra.mxu0 %v1066
      %1099 = vmatprep.subr.bf16.mxu0 %v1069
      %1100 = vmatpush1.bf16.msra.mxu0 %v1068
      %1101 = vmatprep.subr.bf16.mxu0 %v1071
      %1102 = vmatpush1.bf16.msra.mxu0 %v1070
      %1103 = vmatprep.subr.bf16.mxu0 %v1089
      %1104 = vmatpush1.bf16.msra.mxu0 %v1086
      %1105 = vmatprep.subr.bf16.mxu0 0
      %1106 = vmatpush1.bf16.msra.mxu0 0
      %1107 = vmatprep.subr.bf16.mxu0 0
      %1108 = vmatpush1.bf16.msra.mxu0 0
      %1109 = vmatprep.subr.bf16.mxu0 0
      %1110 = vmatpush1.bf16.msra.mxu0 0
      %1111 = vmatprep.subr.bf16.mxu0 0
      %1112 = vmatpush1.bf16.msra.mxu0 0
      %1113 = vmatprep.subr.bf16.mxu0 0
      %1114 = vmatpush1.bf16.msra.mxu0 0
      %1115 = vmatprep.subr.bf16.mxu0 0
      %1116 = vmatpush1.bf16.msra.mxu0 0
      %1117 = vmatprep.subr.bf16.mxu0 0
      %1118 = vmatpush1.bf16.msra.mxu0 0
      %1119 = vmatprep.subr.bf16.mxu0 0
      %1120 = vmatpush1.bf16.msra.mxu0 0
      %1121 = vmatprep.subr.bf16.mxu0 0
      %1122 = vmatpush1.bf16.msra.mxu0 0
      %1123 = vmatprep.mubr.bf16.mxu0 0
      %1124 = vmatmul.mubr.bf16.gmra.mrb[0].mxu0 %v1082
      %v1125 = vpop.f32.mrb[0].mxu0
      %v1126 = vadd.f32 %v1078, %v1125
      %v1127 = vpop.f32.mrb[0].mxu0
      %v1128 = vadd.f32 %v1078, %v1127
      %v1129 = vpop.f32.mrb[0].mxu0
      %v1130 = vpop.f32.mrb[0].mxu0
      %1131 = vdwg.mxu0
      %s1132 = sld [smem:[#allocation7]]
      %vm1133 = vcmp.gt.f32.partialorder %v1126, 0.0
      %vm1134 = vcmp.gt.f32.partialorder %v1128, 0.0
      %v1135 = vstv %s1132
      %v1136 = vmul.f32 %v1135, %v1126
      %v1137 = vmul.f32 %v1135, %v1128
      %v1138 = vsel %vm1133, %v1126, %v1136
      %v1139 = vsel %vm1134, %v1128, %v1137
      %s1140 = ssub.s32 1, %s454
      %p1141 = scmp.gt.s32.totalorder %s1140, 0
      %s1142 = scalar_select %p1141, %s1140, 0
      %s1143 = ssub.s32 17, %s454
      %p1144 = scmp.lt.s32.totalorder %s1143, 10
      %s1145 = scalar_select %p1144, %s1143, 10
      %v1146 = vstv %s1142
      %vm1147 = vcmp.ge.s32.totalorder %v455, %v1146
      %vm1148 = vmand %vm457, %vm1147
      %v1149 = vstv %s1145
      %vm1150 = vcmp.lt.s32.totalorder %v455, %v1149
      %vm1151 = vmand %vm1148, %vm1150
      %v1152 = vsel %vm1151, 1, 0
      %v1153 = vlaneseq
      %v1154 = vshrl.u32 %v1153, 7
      %v1155 = vsub.s32 0, %v1154
      %v1156 = vrot.slane %v1152, %v1155
      %v1157 = vlaneseq
      %v1158 = vshrl.u32 %v1157, 7
      %v1159 = vsub.s32 1, %v1158
      %v1160 = vrot.slane %v1152, %v1159
      %vm1161 = vcmp.eq.s32.totalorder %v1156, 1
      %vm1162 = vcmp.eq.s32.totalorder %v1160, 1
      %v1163 = vsel %vm1161, %v1138, 0.0
      %v1164 = vsel %vm1162, %v1139, 0.0
      %v1165 = vpack.c.bf16 %v1163, %v1163
      %v1166 = vpack.c.bf16 %v1164, %v1164
      %1167 = vst.msk [vmem:[#allocation4] sm:$0x3] %vm721, 0
      %v1170 = vcombine.low %v1165, %v1166
      %v1172 = vunpack.c.l.s4 1983009808
      %v1173 = vunpack.c.0.s8 %v1172
      %v1174 = vlaneseq
      %v1175 = vshrl.u32 %v1174, 7
      %v1176 = vsub.s32 %v1173, %v1175
      %v1177 = vrot.slane %v1170, %v1176
      %1178 = vrot.lane.b32.xlu0 %v1177, 1
      %v1179 = vpop.permute.xlu0 %1178
      %v1180 = vrot.slane %v1179, 6
      %v1181 = vsel %vm736, %v1180, %v1179
      %vm1183 = vcmask 429058
      %vm1184 = vmor %vm1183, %vm739
      %1185 = vst.msk [vmem:[#allocation4] sm:$0xf] %vm1184, %v1181
      %vm1186 = vcmask 566696
      %1187 = vst.msk [vmem:[#allocation4 + $0x2] sm:$0x3] %vm1186, 0
      %v1188 = vld [vmem:[#allocation5] sm:$0xff]
      %v1190 = vunpack.c.l.b16 %v1188
      %v1191 = vunpack.c.h.b16 %v1188
      %v1192 = vpack.c.b16 %v1190, %v1190
      %v1193 = vpack.c.b16 %v1191, %v1191
      %1194 = vrot.lane.b32.xlu0 %v1192, 92
      %v1195 = vpop.permute.xlu0 %1194
      %1196 = vrot.lane.b32.xlu0 %v1193, 92
      %v1197 = vpop.permute.xlu0 %1196
      %v1198 = vsel %vm579, %v1195, %v1197
      %1201 = vst [vmem:[#allocation2] sm:$0xf] %v1198
      %vm1202 = vcmask 125952
      %1203 = vst.msk [vmem:[#allocation2 + $0x8] sm:$0xf] %vm1202, %v1197
      %v1204 = vld [vmem:[#allocation5] sm:$0xff]
      %v1206 = vunpack.c.l.b16 %v1204
      %v1207 = vunpack.c.h.b16 %v1204
      %v1208 = vpack.c.b16 %v1206, %v1206
      %v1209 = vpack.c.b16 %v1207, %v1207
      %1210 = vrot.lane.b32.xlu0 %v1208, 91
      %v1211 = vpop.permute.xlu0 %1210
      %1212 = vrot.lane.b32.xlu0 %v1209, 91
      %v1213 = vpop.permute.xlu0 %1212
      %v1214 = vsel %vm595, %v1211, %v1213
      %1217 = vst [vmem:[#allocation2] sm:$0xf0] %v1214
      %vm1218 = vcmask 130052
      %1219 = vst.msk [vmem:[#allocation2 + $0x8] sm:$0xf0] %vm1218, %v1213
      %v1220 = vld [vmem:[#allocation5] sm:$0xff]
      %v1222 = vunpack.c.l.b16 %v1220
      %v1223 = vunpack.c.h.b16 %v1220
      %v1224 = vpack.c.b16 %v1222, %v1222
      %v1225 = vpack.c.b16 %v1223, %v1223
      %1226 = vrot.lane.b32.xlu0 %v1224, 90
      %v1227 = vpop.permute.xlu0 %1226
      %1228 = vrot.lane.b32.xlu0 %v1225, 90
      %v1229 = vpop.permute.xlu0 %1228
      %v1230 = vsel %vm611, %v1227, %v1229
      %1233 = vst [vmem:[#allocation2 + $0x10] sm:$0xf] %v1230
      %1234 = vst.msk [vmem:[#allocation2 + $0x18] sm:$0xf] %vm1202, %v1229
      %v1235 = vld [vmem:[#allocation5] sm:$0xff]
      %v1237 = vunpack.c.l.b16 %v1235
      %v1238 = vunpack.c.h.b16 %v1235
      %v1239 = vpack.c.b16 %v1237, %v1237
      %v1240 = vpack.c.b16 %v1238, %v1238
      %1241 = vrot.lane.b32.xlu0 %v1239, 74
      %v1242 = vpop.permute.xlu0 %1241
      %1243 = vrot.lane.b32.xlu0 %v1240, 74
      %v1244 = vpop.permute.xlu0 %1243
      %v1245 = vsel %vm847, %v1242, %v1244
      %1248 = vst [vmem:[#allocation2 + $0x10] sm:$0xf0] %v1245
      %1249 = vst.msk [vmem:[#allocation2 + $0x18] sm:$0xf0] %vm1218, %v1244
      %v1250 = vld [vmem:[#allocation5] sm:$0xff]
      %v1252 = vunpack.c.l.b16 %v1250
      %v1253 = vunpack.c.h.b16 %v1250
      %v1254 = vpack.c.b16 %v1252, %v1252
      %v1255 = vpack.c.b16 %v1253, %v1253
      %1256 = vrot.lane.b32.xlu0 %v1254, 73
      %v1257 = vpop.permute.xlu0 %1256
      %1258 = vrot.lane.b32.xlu0 %v1255, 73
      %v1259 = vpop.permute.xlu0 %1258
      %v1260 = vsel %vm863, %v1257, %v1259
      %1263 = vst [vmem:[#allocation2 + $0x20] sm:$0xf] %v1260
      %1264 = vst.msk [vmem:[#allocation2 + $0x28] sm:$0xf] %vm1202, %v1259
      %v1265 = vld [vmem:[#allocation5] sm:$0xff]
      %v1267 = vunpack.c.l.b16 %v1265
      %v1268 = vunpack.c.h.b16 %v1265
      %v1269 = vpack.c.b16 %v1267, %v1267
      %v1270 = vpack.c.b16 %v1268, %v1268
      %1271 = vrot.lane.b32.xlu0 %v1269, 72
      %v1272 = vpop.permute.xlu0 %1271
      %1273 = vrot.lane.b32.xlu0 %v1270, 72
      %v1274 = vpop.permute.xlu0 %1273
      %v1275 = vsel %vm879, %v1272, %v1274
      %1278 = vst [vmem:[#allocation2 + $0x20] sm:$0xf0] %v1275
      %1279 = vst.msk [vmem:[#allocation2 + $0x28] sm:$0xf0] %vm1218, %v1274
      %v1280 = vld [vmem:[#allocation5] sm:$0xff]
      %v1282 = vunpack.c.l.b16 %v1280
      %v1283 = vunpack.c.h.b16 %v1280
      %v1284 = vpack.c.b16 %v1282, %v1282
      %v1285 = vpack.c.b16 %v1283, %v1283
      %1286 = vrot.lane.b32.xlu0 %v1284, 56
      %v1287 = vpop.permute.xlu0 %1286
      %1288 = vrot.lane.b32.xlu0 %v1285, 56
      %v1289 = vpop.permute.xlu0 %1288
      %vm1290 = vcmask 457728
      %v1291 = vsel %vm1290, %v1287, %v1289
      %1294 = vst [vmem:[#allocation2 + $0x30] sm:$0xf] %v1291
      %1295 = vst.msk [vmem:[#allocation2 + $0x38] sm:$0xf] %vm1202, %v1289
      %v1296 = vld [vmem:[#allocation5] sm:$0xff]
      %v1298 = vunpack.c.l.b16 %v1296
      %v1299 = vunpack.c.h.b16 %v1296
      %v1300 = vpack.c.b16 %v1298, %v1298
      %v1301 = vpack.c.b16 %v1299, %v1299
      %1302 = vrot.lane.b32.xlu0 %v1300, 55
      %v1303 = vpop.permute.xlu0 %1302
      %1304 = vrot.lane.b32.xlu0 %v1301, 55
      %v1305 = vpop.permute.xlu0 %1304
      %vm1306 = vcmask 449536
      %v1307 = vsel %vm1306, %v1303, %v1305
      %1310 = vst [vmem:[#allocation2 + $0x30] sm:$0xf0] %v1307
      %1311 = vst.msk [vmem:[#allocation2 + $0x38] sm:$0xf0] %vm1218, %v1305
      %v1312 = vld [vmem:[#allocation5] sm:$0xff]
      %v1314 = vunpack.c.l.b16 %v1312
      %v1315 = vunpack.c.h.b16 %v1312
      %v1316 = vpack.c.b16 %v1314, %v1314
      %v1317 = vpack.c.b16 %v1315, %v1315
      %1318 = vrot.lane.b32.xlu0 %v1316, 54
      %v1319 = vpop.permute.xlu0 %1318
      %1320 = vrot.lane.b32.xlu0 %v1317, 54
      %v1321 = vpop.permute.xlu0 %1320
      %vm1322 = vcmask 441344
      %v1323 = vsel %vm1322, %v1319, %v1321
      %1326 = vst [vmem:[#allocation2 + $0x40] sm:$0xf] %v1323
      %1327 = vst.msk [vmem:[#allocation2 + $0x48] sm:$0xf] %vm1202, %v1321
      %v1328 = vld [vmem:[#allocation3] sm:$0xf]
      %v1331 = vunpack.c.l.s4 1983009808
      %v1332 = vunpack.c.0.s8 %v1331
      %v1333 = vlaneseq
      %v1334 = vshrl.u32 %v1333, 7
      %v1335 = vsub.s32 %v1332, %v1334
      %v1336 = vrot.slane %v1328, %v1335
      %v1337 = vcombine.low %v1336, %v1336
      %1338 = vrot.lane.b32.xlu0 %v1337, 110
      %v1339 = vpop.permute.xlu0 %1338
      %1340 = vrot.lane.b32.xlu0 %v1336, 110
      %v1341 = vpop.permute.xlu0 %1340
      %v1342 = vsel %vm531, %v1339, %v1341
      %1345 = vst [vmem:[#allocation2 + $0x40] sm:$0x30] %v1342
      %vm1346 = vcmask 128004
      %1347 = vst.msk [vmem:[#allocation2 + $0x48] sm:$0x30] %vm1346, %v1341
      %v1348 = vld [vmem:[#allocation3] sm:$0xf]
      %v1350 = vcombine.low %v1348, %v1348
      %v1352 = vunpack.c.l.s4 1983009808
      %v1353 = vunpack.c.0.s8 %v1352
      %v1354 = vlaneseq
      %v1355 = vshrl.u32 %v1354, 7
      %v1356 = vsub.s32 %v1353, %v1355
      %v1357 = vrot.slane %v1350, %v1356
      %v1358 = vcombine.low %v1357, %v1357
      %1359 = vrot.lane.b32.xlu0 %v1358, 109
      %v1360 = vpop.permute.xlu0 %1359
      %1361 = vrot.lane.b32.xlu0 %v1357, 109
      %v1362 = vpop.permute.xlu0 %1361
      %v1363 = vsel %vm547, %v1360, %v1362
      %1366 = vst [vmem:[#allocation2 + $0x40] sm:$0xc0] %v1363
      %vm1367 = vcmask 130054
      %1368 = vst.msk [vmem:[#allocation2 + $0x48] sm:$0xc0] %vm1367, %v1362
      %v1369 = vld [vmem:[#allocation3] sm:$0xf]
      %v1372 = vunpack.c.l.s4 1983009808
      %v1373 = vunpack.c.0.s8 %v1372
      %v1374 = vlaneseq
      %v1375 = vshrl.u32 %v1374, 7
      %v1376 = vsub.s32 %v1373, %v1375
      %v1377 = vrot.slane %v1369, %v1376
      %v1378 = vcombine.high %v1377, %v1377
      %1379 = vrot.lane.b32.xlu0 %v1377, 108
      %v1380 = vpop.permute.xlu0 %1379
      %1381 = vrot.lane.b32.xlu0 %v1378, 108
      %v1382 = vpop.permute.xlu0 %1381
      %v1383 = vsel %vm563, %v1380, %v1382
      %1386 = vst [vmem:[#allocation2 + $0x50] sm:$0x3] %v1383
      %vm1387 = vcmask 123904
      %1388 = vst.msk [vmem:[#allocation2 + $0x58] sm:$0x3] %vm1387, %v1382
      %v1389 = vld [vmem:[#allocation3] sm:$0xf]
      %v1391 = vcombine.low %v1389, %v1389
      %v1393 = vunpack.c.l.s4 1983009808
      %v1394 = vunpack.c.0.s8 %v1393
      %v1395 = vlaneseq
      %v1396 = vshrl.u32 %v1395, 7
      %v1397 = vsub.s32 %v1394, %v1396
      %v1398 = vrot.slane %v1391, %v1397
      %v1399 = vcombine.high %v1398, %v1398
      %1400 = vrot.lane.b32.xlu0 %v1398, 92
      %v1401 = vpop.permute.xlu0 %1400
      %1402 = vrot.lane.b32.xlu0 %v1399, 92
      %v1403 = vpop.permute.xlu0 %1402
      %v1404 = vsel %vm579, %v1401, %v1403
      %1407 = vst [vmem:[#allocation2 + $0x50] sm:$0xc] %v1404
      %vm1408 = vcmask 125954
      %1409 = vst.msk [vmem:[#allocation2 + $0x58] sm:$0xc] %vm1408, %v1403
      %v1410 = vld [vmem:[#allocation3] sm:$0xf]
      %v1413 = vunpack.c.l.s4 1983009808
      %v1414 = vunpack.c.0.s8 %v1413
      %v1415 = vlaneseq
      %v1416 = vshrl.u32 %v1415, 7
      %v1417 = vsub.s32 %v1414, %v1416
      %v1418 = vrot.slane %v1410, %v1417
      %v1419 = vcombine.low %v1418, %v1418
      %1420 = vrot.lane.b32.xlu0 %v1419, 91
      %v1421 = vpop.permute.xlu0 %1420
      %1422 = vrot.lane.b32.xlu0 %v1418, 91
      %v1423 = vpop.permute.xlu0 %1422
      %v1424 = vsel %vm595, %v1421, %v1423
      %1427 = vst [vmem:[#allocation2 + $0x50] sm:$0x30] %v1424
      %1428 = vst.msk [vmem:[#allocation2 + $0x58] sm:$0x30] %vm1346, %v1423
      %v1429 = vld [vmem:[#allocation3] sm:$0xf]
      %v1431 = vcombine.low %v1429, %v1429
      %v1433 = vunpack.c.l.s4 1983009808
      %v1434 = vunpack.c.0.s8 %v1433
      %v1435 = vlaneseq
      %v1436 = vshrl.u32 %v1435, 7
      %v1437 = vsub.s32 %v1434, %v1436
      %v1438 = vrot.slane %v1431, %v1437
      %v1439 = vcombine.low %v1438, %v1438
      %1440 = vrot.lane.b32.xlu0 %v1439, 90
      %v1441 = vpop.permute.xlu0 %1440
      %1442 = vrot.lane.b32.xlu0 %v1438, 90
      %v1443 = vpop.permute.xlu0 %1442
      %v1444 = vsel %vm611, %v1441, %v1443
      %1447 = vst [vmem:[#allocation2 + $0x50] sm:$0xc0] %v1444
      %1448 = vst.msk [vmem:[#allocation2 + $0x58] sm:$0xc0] %vm1367, %v1443
      %v1449 = vld [vmem:[#allocation3] sm:$0xf]
      %v1452 = vunpack.c.l.s4 1983009808
      %v1453 = vunpack.c.0.s8 %v1452
      %v1454 = vlaneseq
      %v1455 = vshrl.u32 %v1454, 7
      %v1456 = vsub.s32 %v1453, %v1455
      %v1457 = vrot.slane %v1449, %v1456
      %v1458 = vcombine.high %v1457, %v1457
      %1459 = vrot.lane.b32.xlu0 %v1457, 74
      %v1460 = vpop.permute.xlu0 %1459
      %1461 = vrot.lane.b32.xlu0 %v1458, 74
      %v1462 = vpop.permute.xlu0 %1461
      %v1463 = vsel %vm847, %v1460, %v1462
      %1466 = vst [vmem:[#allocation2 + $0x60] sm:$0x3] %v1463
      %1467 = vst.msk [vmem:[#allocation2 + $0x68] sm:$0x3] %vm1387, %v1462
      %v1468 = vld [vmem:[#allocation3] sm:$0xf]
      %v1470 = vcombine.low %v1468, %v1468
      %v1472 = vunpack.c.l.s4 1983009808
      %v1473 = vunpack.c.0.s8 %v1472
      %v1474 = vlaneseq
      %v1475 = vshrl.u32 %v1474, 7
      %v1476 = vsub.s32 %v1473, %v1475
      %v1477 = vrot.slane %v1470, %v1476
      %v1478 = vcombine.high %v1477, %v1477
      %1479 = vrot.lane.b32.xlu0 %v1477, 73
      %v1480 = vpop.permute.xlu0 %1479
      %1481 = vrot.lane.b32.xlu0 %v1478, 73
      %v1482 = vpop.permute.xlu0 %1481
      %v1483 = vsel %vm863, %v1480, %v1482
      %1486 = vst [vmem:[#allocation2 + $0x60] sm:$0xc] %v1483
      %1487 = vst.msk [vmem:[#allocation2 + $0x68] sm:$0xc] %vm1408, %v1482
      %v1488 = vld [vmem:[#allocation3] sm:$0xf]
      %v1491 = vunpack.c.l.s4 1983009808
      %v1492 = vunpack.c.0.s8 %v1491
      %v1493 = vlaneseq
      %v1494 = vshrl.u32 %v1493, 7
      %v1495 = vsub.s32 %v1492, %v1494
      %v1496 = vrot.slane %v1488, %v1495
      %v1497 = vcombine.low %v1496, %v1496
      %1498 = vrot.lane.b32.xlu0 %v1497, 72
      %v1499 = vpop.permute.xlu0 %1498
      %1500 = vrot.lane.b32.xlu0 %v1496, 72
      %v1501 = vpop.permute.xlu0 %1500
      %v1502 = vsel %vm879, %v1499, %v1501
      %1505 = vst [vmem:[#allocation2 + $0x60] sm:$0x30] %v1502
      %1506 = vst.msk [vmem:[#allocation2 + $0x68] sm:$0x30] %vm1346, %v1501
      %v1507 = vld [vmem:[#allocation4] sm:$0xf]
      %v1509 = vcombine.low %v1507, %v1507
      %v1511 = vunpack.c.l.s4 1983009808
      %v1512 = vunpack.c.0.s8 %v1511
      %v1513 = vlaneseq
      %v1514 = vshrl.u32 %v1513, 7
      %v1515 = vsub.s32 %v1512, %v1514
      %v1516 = vrot.slane %v1509, %v1515
      %v1517 = vcombine.low %v1516, %v1516
      %1520 = vst [vmem:[#allocation2 + $0x60] sm:$0xc0] %v1517
      %1521 = vst.msk [vmem:[#allocation2 + $0x68] sm:$0xc0] %vm1367, %v1516
      %v1522 = vld [vmem:[#allocation4] sm:$0xf]
      %v1525 = vunpack.c.l.s4 1983009808
      %v1526 = vunpack.c.0.s8 %v1525
      %v1527 = vlaneseq
      %v1528 = vshrl.u32 %v1527, 7
      %v1529 = vsub.s32 %v1526, %v1528
      %v1530 = vrot.slane %v1522, %v1529
      %v1531 = vcombine.high %v1530, %v1530
      %1532 = vrot.lane.b32.xlu0 %v1530, 127
      %v1533 = vpop.permute.xlu0 %1532
      %1534 = vrot.lane.b32.xlu0 %v1531, 127
      %v1535 = vpop.permute.xlu0 %1534
      %v1536 = vsel %vm498, %v1533, %v1535
      %1539 = vst [vmem:[#allocation2 + $0x70] sm:$0x3] %v1536
      %1540 = vst.msk [vmem:[#allocation2 + $0x78] sm:$0x3] %vm1387, %v1535
      %v1541 = vld [vmem:[#allocation4] sm:$0xf]
      %v1543 = vcombine.low %v1541, %v1541
      %v1545 = vunpack.c.l.s4 1983009808
      %v1546 = vunpack.c.0.s8 %v1545
      %v1547 = vlaneseq
      %v1548 = vshrl.u32 %v1547, 7
      %v1549 = vsub.s32 %v1546, %v1548
      %v1550 = vrot.slane %v1543, %v1549
      %v1551 = vcombine.high %v1550, %v1550
      %1552 = vrot.lane.b32.xlu0 %v1550, 126
      %v1553 = vpop.permute.xlu0 %1552
      %1554 = vrot.lane.b32.xlu0 %v1551, 126
      %v1555 = vpop.permute.xlu0 %1554
      %v1556 = vsel %vm515, %v1553, %v1555
      %1559 = vst [vmem:[#allocation2 + $0x70] sm:$0xc] %v1556
      %1560 = vst.msk [vmem:[#allocation2 + $0x78] sm:$0xc] %vm1408, %v1555
      %v1561 = vld [vmem:[#allocation4] sm:$0xf]
      %v1564 = vunpack.c.l.s4 1983009808
      %v1565 = vunpack.c.0.s8 %v1564
      %v1566 = vlaneseq
      %v1567 = vshrl.u32 %v1566, 7
      %v1568 = vsub.s32 %v1565, %v1567
      %v1569 = vrot.slane %v1561, %v1568
      %v1570 = vcombine.low %v1569, %v1569
      %1571 = vrot.lane.b32.xlu0 %v1570, 110
      %v1572 = vpop.permute.xlu0 %1571
      %1573 = vrot.lane.b32.xlu0 %v1569, 110
      %v1574 = vpop.permute.xlu0 %1573
      %v1575 = vsel %vm531, %v1572, %v1574
      %1578 = vst [vmem:[#allocation2 + $0x70] sm:$0x30] %v1575
      %1579 = vst.msk [vmem:[#allocation2 + $0x78] sm:$0x30] %vm1346, %v1574
      %v1580 = vld [vmem:[#allocation4] sm:$0xf]
      %v1582 = vcombine.low %v1580, %v1580
      %v1584 = vunpack.c.l.s4 1983009808
      %v1585 = vunpack.c.0.s8 %v1584
      %v1586 = vlaneseq
      %v1587 = vshrl.u32 %v1586, 7
      %v1588 = vsub.s32 %v1585, %v1587
      %v1589 = vrot.slane %v1582, %v1588
      %v1590 = vcombine.low %v1589, %v1589
      %1591 = vrot.lane.b32.xlu0 %v1590, 109
      %v1592 = vpop.permute.xlu0 %1591
      %1593 = vrot.lane.b32.xlu0 %v1589, 109
      %v1594 = vpop.permute.xlu0 %1593
      %v1595 = vsel %vm547, %v1592, %v1594
      %1598 = vst [vmem:[#allocation2 + $0x70] sm:$0xc0] %v1595
      %1599 = vst.msk [vmem:[#allocation2 + $0x78] sm:$0xc0] %vm1367, %v1594
      %v1600 = vld [vmem:[#allocation4] sm:$0xf]
      %v1603 = vunpack.c.l.s4 1983009808
      %v1604 = vunpack.c.0.s8 %v1603
      %v1605 = vlaneseq
      %v1606 = vshrl.u32 %v1605, 7
      %v1607 = vsub.s32 %v1604, %v1606
      %v1608 = vrot.slane %v1600, %v1607
      %v1609 = vcombine.high %v1608, %v1608
      %1610 = vrot.lane.b32.xlu0 %v1608, 108
      %v1611 = vpop.permute.xlu0 %1610
      %1612 = vrot.lane.b32.xlu0 %v1609, 108
      %v1613 = vpop.permute.xlu0 %1612
      %v1614 = vsel %vm563, %v1611, %v1613
      %1617 = vst [vmem:[#allocation2 + $0x80] sm:$0x3] %v1614
      %1618 = vst.msk [vmem:[#allocation2 + $0x88] sm:$0x3] %vm1387, %v1613
      %v1619 = vld [vmem:[#allocation4] sm:$0xf]
      %v1621 = vcombine.low %v1619, %v1619
      %v1623 = vunpack.c.l.s4 1983009808
      %v1624 = vunpack.c.0.s8 %v1623
      %v1625 = vlaneseq
      %v1626 = vshrl.u32 %v1625, 7
      %v1627 = vsub.s32 %v1624, %v1626
      %v1628 = vrot.slane %v1621, %v1627
      %v1629 = vcombine.high %v1628, %v1628
      %1630 = vrot.lane.b32.xlu0 %v1628, 92
      %v1631 = vpop.permute.xlu0 %1630
      %1632 = vrot.lane.b32.xlu0 %v1629, 92
      %v1633 = vpop.permute.xlu0 %1632
      %v1634 = vsel %vm579, %v1631, %v1633
      %1637 = vst [vmem:[#allocation2 + $0x80] sm:$0xc] %v1634
      %1638 = vst.msk [vmem:[#allocation2 + $0x88] sm:$0xc] %vm1408, %v1633
      %v1639 = vld [vmem:[#allocation4] sm:$0xf]
      %v1642 = vunpack.c.l.s4 1983009808
      %v1643 = vunpack.c.0.s8 %v1642
      %v1644 = vlaneseq
      %v1645 = vshrl.u32 %v1644, 7
      %v1646 = vsub.s32 %v1643, %v1645
      %v1647 = vrot.slane %v1639, %v1646
      %v1648 = vcombine.low %v1647, %v1647
      %1649 = vrot.lane.b32.xlu0 %v1648, 91
      %v1650 = vpop.permute.xlu0 %1649
      %1651 = vrot.lane.b32.xlu0 %v1647, 91
      %v1652 = vpop.permute.xlu0 %1651
      %v1653 = vsel %vm595, %v1650, %v1652
      %1656 = vst [vmem:[#allocation2 + $0x80] sm:$0x30] %v1653
      %1657 = vst.msk [vmem:[#allocation2 + $0x88] sm:$0x30] %vm1346, %v1652
      %v1658 = vld [vmem:[#allocation4] sm:$0xf]
      %v1660 = vcombine.low %v1658, %v1658
      %v1662 = vunpack.c.l.s4 1983009808
      %v1663 = vunpack.c.0.s8 %v1662
      %v1664 = vlaneseq
      %v1665 = vshrl.u32 %v1664, 7
      %v1666 = vsub.s32 %v1663, %v1665
      %v1667 = vrot.slane %v1660, %v1666
      %v1668 = vcombine.low %v1667, %v1667
      %1669 = vrot.lane.b32.xlu0 %v1668, 90
      %v1670 = vpop.permute.xlu0 %1669
      %1671 = vrot.lane.b32.xlu0 %v1667, 90
      %v1672 = vpop.permute.xlu0 %1671
      %v1673 = vsel %vm611, %v1670, %v1672
      %1676 = vst [vmem:[#allocation2 + $0x80] sm:$0xc0] %v1673
      %1677 = vst.msk [vmem:[#allocation2 + $0x88] sm:$0xc0] %vm1367, %v1672
      %v1678 = vld [vmem:[%s9] sm:$0xff]
      %v1679 = vld [vmem:[#allocation2] sm:$0xff]
      %v1680 = vld [vmem:[#allocation2 + $0x8] sm:$0xff]
      %v1681 = vld [vmem:[#allocation2 + $0x10] sm:$0xff]
      %v1682 = vld [vmem:[#allocation2 + $0x18] sm:$0xff]
      %v1683 = vld [vmem:[#allocation2 + $0x20] sm:$0xff]
      %v1684 = vld [vmem:[#allocation2 + $0x28] sm:$0xff]
      %v1685 = vld [vmem:[#allocation2 + $0x30] sm:$0xff]
      %v1686 = vld [vmem:[#allocation2 + $0x38] sm:$0xff]
      %v1687 = vld [vmem:[#allocation2 + $0x40] sm:$0xff]
      %v1688 = vld [vmem:[#allocation2 + $0x48] sm:$0xff]
      %v1689 = vld [vmem:[#allocation2 + $0x50] sm:$0xff]
      %v1690 = vld [vmem:[#allocation2 + $0x58] sm:$0xff]
      %v1691 = vld [vmem:[#allocation2 + $0x60] sm:$0xff]
      %v1692 = vld [vmem:[#allocation2 + $0x68] sm:$0xff]
      %v1693 = vld [vmem:[#allocation2 + $0x70] sm:$0xff]
      %v1694 = vld [vmem:[#allocation2 + $0x78] sm:$0xff]
      %v1695 = vld [vmem:[#allocation2 + $0x80] sm:$0xff]
      %v1696 = vld [vmem:[#allocation2 + $0x88] sm:$0xff]
      %v1697 = vld [vmem:[%s10] sm:$0xff]
      %1699 = vset.pattern.permute.xlu0 0
      %1700 = vperm.xlu0 %1699, %v1697
      %v1701 = vpop.permute.xlu0 %1700
      %v1704 = vunpack.c.l.b16 %v1678
      %v1705 = vunpack.c.h.b16 %v1678
      %v1706 = vpack.c.b16 %v1704, %v1704
      %v1707 = vpack.c.b16 %v1705, %v1705
      %vm1709 = vcmask 130048
      %v1711 = vsel %vm1709, %v1707, 0
      %1713 = vmatprep.subr.bf16.mxu0 %v1680
      %1714 = vmatpush1.bf16.msra.mxu0 %v1679
      %1715 = vmatprep.subr.bf16.mxu0 %v1682
      %1716 = vmatpush1.bf16.msra.mxu0 %v1681
      %1717 = vmatprep.subr.bf16.mxu0 %v1684
      %1718 = vmatpush1.bf16.msra.mxu0 %v1683
      %1719 = vmatprep.subr.bf16.mxu0 %v1686
      %1720 = vmatpush1.bf16.msra.mxu0 %v1685
      %1721 = vmatprep.subr.bf16.mxu0 %v1688
      %1722 = vmatpush1.bf16.msra.mxu0 %v1687
      %1723 = vmatprep.subr.bf16.mxu0 %v1690
      %1724 = vmatpush1.bf16.msra.mxu0 %v1689
      %1725 = vmatprep.subr.bf16.mxu0 %v1692
      %1726 = vmatpush1.bf16.msra.mxu0 %v1691
      %1727 = vmatprep.subr.bf16.mxu0 %v1694
      %1728 = vmatpush1.bf16.msra.mxu0 %v1693
      %1729 = vmatprep.subr.bf16.mxu0 %v1696
      %1730 = vmatpush1.bf16.msra.mxu0 %v1695
      %1731 = vmatprep.subr.bf16.mxu0 0
      %1732 = vmatpush1.bf16.msra.mxu0 0
      %1733 = vmatprep.subr.bf16.mxu0 0
      %1734 = vmatpush1.bf16.msra.mxu0 0
      %1735 = vmatprep.subr.bf16.mxu0 0
      %1736 = vmatpush1.bf16.msra.mxu0 0
      %1737 = vmatprep.subr.bf16.mxu0 0
      %1738 = vmatpush1.bf16.msra.mxu0 0
      %1739 = vmatprep.subr.bf16.mxu0 0
      %1740 = vmatpush1.bf16.msra.mxu0 0
      %1741 = vmatprep.subr.bf16.mxu0 0
      %1742 = vmatpush1.bf16.msra.mxu0 0
      %1743 = vmatprep.subr.bf16.mxu0 0
      %1744 = vmatpush1.bf16.msra.mxu0 0
      %1745 = vmatprep.mubr.bf16.mxu0 %v1711
      %1746 = vmatmul.mubr.bf16.gmra.mrb[0].mxu0 %v1706
      %v1747 = vpop.f32.mrb[0].mxu0
      %v1748 = vadd.f32 %v1701, %v1747
      %v1749 = vpop.f32.mrb[0].mxu0
      %v1750 = vadd.f32 %v1701, %v1749
      %v1751 = vpop.f32.mrb[0].mxu0
      %v1752 = vpop.f32.mrb[0].mxu0
      %1753 = vdwg.mxu0
      %s1754 = sld [smem:[#allocation8]]
      %vm1755 = vcmp.gt.f32.partialorder %v1748, 0.0
      %vm1756 = vcmp.gt.f32.partialorder %v1750, 0.0
      %v1757 = vstv %s1754
      %v1758 = vmul.f32 %v1757, %v1748
      %v1759 = vmul.f32 %v1757, %v1750
      %v1760 = vsel %vm1755, %v1748, %v1758
      %v1761 = vsel %vm1756, %v1750, %v1759
      %v1762 = vld [vmem:[%s443] sm:$0xff]
      %v1763 = vld [vmem:[%s443 + $0x8] sm:$0xff]
      %1766 = vrot.lane.b32.xlu0 %v1762, 73
      %v1767 = vpop.permute.xlu0 %1766
      %1768 = vrot.lane.b32.xlu0 %v1763, 73
      %v1769 = vpop.permute.xlu0 %1768
      %vm1770 = vcmask 596992
      %v1771 = vsel %vm1770, %v1767, %v1769
      %v1774 = vadd.f32 %v1760, %v1771
      %v1775 = vadd.f32 %v1761, %v1769
      %1776 = vst [vmem:[%s452] sm:$0xff] %v1774
      %1777 = vst.msk [vmem:[%s452 + $0x8] sm:$0xff] %vm1709, %v1775
      %p1778 = scmp.lt.s32.totalorder %s30, 1
      %s1779 = scalar_select %p1778, %s30, 1
      %p1780 = scmp.lt.s32.totalorder %s31, 1
      %s1781 = scalar_select %p1780, %s31, 1
      %s1782 = smul.addr %s1781, 2
      %s1783 = smul.addr %s1779, 4
      %s1784 = sadd.s32 %s1782, %s1783
      %s1785 = smul.addr %s1784, 8
      %s1786 = scalar_lea.vmem %s12, %s1785
      // Predicated region
      $region69: #{_lambda_.1} parent=67 // pred_check
        %p1787 = pneg %p317
      $region70: #{_lambda_.1} parent=67 // pred_check_branch
        %1789 = sbr.rel (%p1787) target = $region72
      $region71: #{_lambda_.1} parent=67 // pred_region
        _
      $region72: #{_lambda_.1} parent=67 // pred_fallthru
        _
    $region68: #{_lambda_.1} parent=5 // pred_fallthru
      _
    %p1790 = scmp.le.s32.totalorder 2, %s21
    // Predicated region
    $region73: #{_lambda_.1} parent=5 // pred_check
      %p1791 = pneg %p1790
    $region74: #{_lambda_.1} parent=5 // pred_check_branch
      %1793 = sbr.rel (%p1791) target = $region76
    $region75: #{_lambda_.1} parent=5 // pred_region
      %s1794 = ssub.s32 %s21, 2
      // Predicated region
      $region77: #{_lambda_.1} parent=75 // pred_check
        %p1795 = pneg %p323
      $region78: #{_lambda_.1} parent=75 // pred_check_branch
        %1797 = sbr.rel (%p1795) target = $region80
      $region79: #{_lambda_.1} parent=75 // pred_region
        %p1798 = scmp.lt.s32.totalorder %s32, 1
        %s1799 = scalar_select %p1798, %s32, 1
        %p1800 = scmp.lt.s32.totalorder %s33, 1
        %s1801 = scalar_select %p1800, %s33, 1
        %s1802 = smul.addr %s1801, 2
        %s1803 = smul.addr %s1799, 4
        %s1804 = sadd.s32 %s1802, %s1803
        %s1805 = smul.addr %s1804, 8
        %s1806 = scalar_lea.vmem %s12, %s1805
      $region80: #{_lambda_.1} parent=75 // pred_fallthru
        _
    $region76: #{_lambda_.1} parent=5 // pred_fallthru
      _
  $region6: #{_lambda_.1} parent=0 // loop_footer
    %s25 = sadd.s32 1, %s21
  $region7: #{_lambda_.1} parent=0 // loop_footer_branch
    %20 = sbr.rel target = $region3
  $region8: #{_lambda_.1} parent=0 // loop_exit
    _

</llo_original>
